<compile_context>
chip_gen: v6e
topology: v6e:2x2x1
jax: 0.10.0
libtpu: 0.0.40
codegen_flags: <defaults>
</compile_context>

<pallas_src>
import functools
import math

import jax
import jax.numpy as jnp
from jax.experimental import pallas as pl
from jax.experimental.pallas import tpu as pltpu


# ---------------------------------------------------------------------------
# VMEM budget / tiling helpers (derived from the actual TPU generation)
# ---------------------------------------------------------------------------
def _vmem_limit_bytes():
    cap = 64 * 1024 * 1024                     # conservative default (v7x VMEM)
    try:
        cap = int(pltpu.get_tpu_info().vmem_capacity_bytes)
    except Exception:
        pass
    # 75% of physical (96 MiB on 128 MiB parts, 48 MiB on 64 MiB parts),
    # always leaving >= 8 MiB headroom for compiler-internal scratch.
    return max(32 * 1024 * 1024, min(int(cap * 0.75), cap - 8 * 1024 * 1024))


_VMEM_LIMIT = _vmem_limit_bytes()
_SINGLE_BUFFER_BYTES = 4 * 1024 * 1024         # single-buffer weights above this


def _cparams(semantics):
    return pltpu.CompilerParams(dimension_semantics=semantics,
                                vmem_limit_bytes=_VMEM_LIMIT)


def _const_weight_spec(block_shape, index_map, nbytes):
    """BlockSpec for a grid-invariant weight; single-buffer when large so big
    matrices are not held twice in VMEM by the pipeline."""
    if nbytes >= _SINGLE_BUFFER_BYTES and hasattr(pl, "Buffered"):
        try:
            return pl.BlockSpec(block_shape, index_map,
                                pipeline_mode=pl.Buffered(1))
        except TypeError:                      # older pallas without pipeline_mode
            pass
    return pl.BlockSpec(block_shape, index_map)


def _pick_row_tile(m, per_row_bytes, resident_bytes):
    budget = _VMEM_LIMIT - resident_bytes - (4 << 20)
    for cand in (2048, 1024, 512, 256, 128):
        if cand <= m and m % cand == 0 and cand * per_row_bytes <= budget:
            return cand
    return 128


def _pick_seq_tile(s, d, heads, dh):
    # q/k/v/res/out blocks (double-buffered bf16) + f32 scores + stats/acc scratch.
    budget = _VMEM_LIMIT - 4 * d * d - (4 << 20)
    for t in (512, 256, 128):
        if t <= s and s % t == 0:
            need = 24 * d * t + 8 * t * t + 16 * heads * t
            if need <= budget:
                return t
    return 128


def _pick_ffn_chunk(f_dim, d):
    # Keep W1/W2 fully resident when they fit comfortably; otherwise tile the
    # hidden dim (bounds the (tm, tf) f32 intermediate and weight residency).
    budget = int(_VMEM_LIMIT * 0.4)
    for tf in (f_dim, 4096, 2048, 1024, 512, 256, 128):
        if tf <= f_dim and f_dim % tf == 0 and 8 * d * tf <= budget:
            return tf
    return 128 if f_dim % 128 == 0 else f_dim


# ---------------------------------------------------------------------------
# Kernel bodies
# ---------------------------------------------------------------------------
def _ln_qkv_kernel(x_ref, g_ref, b_ref, w_ref, bqkv_ref, q_ref, k_ref, v_ref,
                   *, eps, heads, dh):
    # LayerNorm (f32 stats) fused with the single (D, 3D) QKV projection.
    # Outputs are head-major (H, rows, dh) so the attention kernel never has to
    # lane-slice sub-128 head chunks per kv step (slicing happens once per tile).
    x = x_ref[...].astype(jnp.float32)
    mu = jnp.mean(x, axis=-1, keepdims=True)
    var = jnp.mean(jnp.square(x - mu), axis=-1, keepdims=True)
    h = (x - mu) * jax.lax.rsqrt(var + eps)
    h = h * g_ref[...].astype(jnp.float32) + b_ref[...].astype(jnp.float32)
    y = jnp.dot(h.astype(w_ref.dtype), w_ref[...],
                preferred_element_type=jnp.float32)
    y = y + bqkv_ref[...].astype(jnp.float32)
    d = heads * dh
    for hh in range(heads):
        q_ref[hh] = y[:, hh * dh:(hh + 1) * dh].astype(q_ref.dtype)
        k_ref[hh] = y[:, d + hh * dh:d + (hh + 1) * dh].astype(k_ref.dtype)
        v_ref[hh] = y[:, 2 * d + hh * dh:2 * d + (hh + 1) * dh].astype(v_ref.dtype)


def _flash_attn_wo_kernel(q_ref, k_ref, v_ref, wo_ref, bo_ref, res_ref, o_ref,
                          m_sc, l_sc, acc_sc, *, heads, scale, nb):
    # Flash-style causal attention fused with the output projection + residual.
    # grid = (B * Sq_blocks, Sk_blocks); kv axis last (reduction, "arbitrary").
    # Above-diagonal kv steps are pure no-ops (their kv index_map is clamped, so
    # they also move no data).
    qb = pl.program_id(0) % nb
    kb = pl.program_id(1)
    tq = q_ref.shape[1]
    tk = k_ref.shape[1]

    @pl.when(kb == 0)
    def _init():
        m_sc[...] = jnp.full_like(m_sc, -1e30)
        l_sc[...] = jnp.zeros_like(l_sc)
        acc_sc[...] = jnp.zeros_like(acc_sc)

    def _attn_step(masked):
        if masked:
            row = jax.lax.broadcasted_iota(jnp.int32, (tq, tk), 0)
            col = jax.lax.broadcasted_iota(jnp.int32, (tq, tk), 1)
            keep = col <= row
        for hh in range(heads):                 # leading-dim head index (lane-dense)
            q_h = q_ref[hh]                     # (tq, dh)
            k_h = k_ref[hh]                     # (tk, dh)
            v_h = v_ref[hh]
            s = jax.lax.dot_general(q_h, k_h, (((1,), (1,)), ((), ())),
                                    preferred_element_type=jnp.float32) * scale
            if masked:                          # mask only on the diagonal block
                s = jnp.where(keep, s, -1e30)
            m_prev = m_sc[hh]
            m_new = jnp.maximum(m_prev, jnp.max(s, axis=-1, keepdims=True))
            alpha = jnp.exp(m_prev - m_new)
            p = jnp.exp(s - m_new)
            l_sc[hh] = alpha * l_sc[hh] + jnp.sum(p, axis=-1, keepdims=True)
            acc_sc[hh] = alpha * acc_sc[hh] + jnp.dot(
                p.astype(v_h.dtype), v_h, preferred_element_type=jnp.float32)
            m_sc[hh] = m_new

    @pl.when(kb < qb)                           # strictly below diagonal: unmasked
    def _off_diag():
        _attn_step(masked=False)

    @pl.when(kb == qb)                          # diagonal block: mask + finalize
    def _diag_and_finalize():
        _attn_step(masked=True)
        y = res_ref[...].astype(jnp.float32) + bo_ref[...].astype(jnp.float32)
        for hh in range(heads):                 # per-head Wo slab: no lane concat
            inv = pl.reciprocal(l_sc[hh], approx=False)
            out_h = (acc_sc[hh] * inv).astype(wo_ref.dtype)
            y = y + jnp.dot(out_h, wo_ref[hh], preferred_element_type=jnp.float32)
        o_ref[...] = y.astype(o_ref.dtype)


def _ffn_kernel(x_ref, g_ref, b_ref, w1_ref, b1_ref, w2_ref, b2_ref, o_ref,
                ln_sc, acc_sc, *, eps):
    # out = x + W2 @ GELU(W1 @ LN(x)); hidden dim tiled over the last grid axis,
    # LN(x) computed once and cached in VMEM scratch, f32 accumulator resident.
    f = pl.program_id(1)
    nf = pl.num_programs(1)

    @pl.when(f == 0)
    def _first():
        x = x_ref[...].astype(jnp.float32)
        mu = jnp.mean(x, axis=-1, keepdims=True)
        var = jnp.mean(jnp.square(x - mu), axis=-1, keepdims=True)
        h = (x - mu) * jax.lax.rsqrt(var + eps)
        h = h * g_ref[...].astype(jnp.float32) + b_ref[...].astype(jnp.float32)
        ln_sc[...] = h.astype(ln_sc.dtype)
        acc_sc[...] = x + b2_ref[...].astype(jnp.float32)

    h1 = jnp.dot(ln_sc[...], w1_ref[...], preferred_element_type=jnp.float32)
    # TODO(synk): PyTorch nn.GELU defaults to exact erf; tanh approximation kept.
    h1 = jax.nn.gelu(h1 + b1_ref[...].astype(jnp.float32))
    acc_sc[...] = acc_sc[...] + jnp.dot(h1.astype(w2_ref.dtype), w2_ref[...],
                                        preferred_element_type=jnp.float32)

    @pl.when(f == nf - 1)
    def _last():
        o_ref[...] = acc_sc[...].astype(o_ref.dtype)


# ---------------------------------------------------------------------------
# Wrappers
# ---------------------------------------------------------------------------
def pallas_ln_qkv(x, g, b, w_qkv, b_qkv, heads, eps=1e-5):
    m, d = x.shape
    dh = d // heads
    wbytes = w_qkv.size * w_qkv.dtype.itemsize
    tm = _pick_row_tile(m, per_row_bytes=36 * d, resident_bytes=2 * wbytes)
    row_spec = pl.BlockSpec((tm, d), lambda i: (i, 0))
    head_spec = pl.BlockSpec((heads, tm, dh), lambda i: (0, i, 0))
    out_sd = jax.ShapeDtypeStruct((heads, m, dh), x.dtype)
    return pl.pallas_call(
        functools.partial(_ln_qkv_kernel, eps=eps, heads=heads, dh=dh),
        out_shape=(out_sd, out_sd, out_sd),
        grid=(m // tm,),
        in_specs=[
            row_spec,
            pl.BlockSpec((1, d), lambda i: (0, 0)),
            pl.BlockSpec((1, d), lambda i: (0, 0)),
            _const_weight_spec((d, 3 * d), lambda i: (0, 0), wbytes),
            pl.BlockSpec((1, 3 * d), lambda i: (0, 0)),
        ],
        out_specs=(head_spec, head_spec, head_spec),
        compiler_params=_cparams(("parallel",)),
    )(x, g.reshape(1, d), b.reshape(1, d), w_qkv, b_qkv.reshape(1, 3 * d))


def pallas_flash_causal_attention_wo(q, k, v, wo_h, bo, residual, batch, seq):
    heads, m, dh = q.shape
    d = heads * dh
    t = _pick_seq_tile(seq, d, heads, dh)
    nb = seq // t
    scale = 1.0 / math.sqrt(dh)

    def q_map(bq, j):
        return (0, bq, 0)

    def kv_map(bq, j):
        # Clamp the kv block to the q block: above-diagonal (masked) steps map to
        # the already-resident block and therefore generate no DMA traffic.
        base = (bq // nb) * nb
        return (0, jnp.minimum(bq, base + j), 0)

    def row_map(bq, j):
        return (bq, 0)

    head_spec = pl.BlockSpec((heads, t, dh), q_map)
    kv_spec = pl.BlockSpec((heads, t, dh), kv_map)
    row_spec = pl.BlockSpec((t, d), row_map)
    wo_bytes = wo_h.size * wo_h.dtype.itemsize

    return pl.pallas_call(
        functools.partial(_flash_attn_wo_kernel, heads=heads, scale=scale, nb=nb),
        out_shape=jax.ShapeDtypeStruct((m, d), residual.dtype),
        grid=(batch * nb, nb),
        in_specs=[
            head_spec, kv_spec, kv_spec,
            _const_weight_spec((heads, dh, d), lambda bq, j: (0, 0, 0), wo_bytes),
            pl.BlockSpec((1, d), lambda bq, j: (0, 0)),
            row_spec,
        ],
        out_specs=row_spec,
        scratch_shapes=[
            pltpu.VMEM((heads, t, 1), jnp.float32),   # running max
            pltpu.VMEM((heads, t, 1), jnp.float32),   # running sum
            pltpu.VMEM((heads, t, dh), jnp.float32),  # output accumulator
        ],
        compiler_params=_cparams(("parallel", "arbitrary")),
    )(q, k, v, wo_h, bo.reshape(1, d), residual)


def pallas_ffn(x, g, b, w1, b1, w2, b2, eps=1e-5):
    m, d = x.shape
    f_dim = w1.shape[1]
    tf = _pick_ffn_chunk(f_dim, d)
    nf = f_dim // tf
    tm = _pick_row_tile(m, per_row_bytes=24 * d + 8 * tf, resident_bytes=8 * d * tf)
    row_spec = pl.BlockSpec((tm, d), lambda i, f: (i, 0))
    w1_bytes = w1.size * w1.dtype.itemsize
    w2_bytes = w2.size * w2.dtype.itemsize
    if nf == 1:
        w1_spec = _const_weight_spec((d, tf), lambda i, f: (0, 0), w1_bytes)
        w2_spec = _const_weight_spec((tf, d), lambda i, f: (0, 0), w2_bytes)
    else:
        w1_spec = pl.BlockSpec((d, tf), lambda i, f: (0, f))
        w2_spec = pl.BlockSpec((tf, d), lambda i, f: (f, 0))
    return pl.pallas_call(
        functools.partial(_ffn_kernel, eps=eps),
        out_shape=jax.ShapeDtypeStruct((m, d), x.dtype),
        grid=(m // tm, nf),
        in_specs=[
            row_spec,
            pl.BlockSpec((1, d), lambda i, f: (0, 0)),
            pl.BlockSpec((1, d), lambda i, f: (0, 0)),
            w1_spec,
            pl.BlockSpec((1, tf), lambda i, f: (0, f)),
            w2_spec,
            pl.BlockSpec((1, d), lambda i, f: (0, 0)),
        ],
        out_specs=row_spec,
        scratch_shapes=[pltpu.VMEM((tm, d), w1.dtype),      # cached LN(x)
                        pltpu.VMEM((tm, d), jnp.float32)],  # f32 accumulator
        compiler_params=_cparams(("parallel", "arbitrary")),
    )(x, g.reshape(1, d), b.reshape(1, d), w1, b1.reshape(1, f_dim), w2,
      b2.reshape(1, d))


# ---------------------------------------------------------------------------
# Parameter init (deterministic, synthetic; bf16 weights, f32 LN/bias params)
# ---------------------------------------------------------------------------
def init_params(key, vocab_size, dim, heads, depth, n_vec_raw, n_class):
    bucket = 64 * 2
    n_vec = math.ceil(n_vec_raw / bucket) * bucket
    assert dim % heads == 0
    dh = dim // heads

    def normal(k, shape, scale=0.02, dtype=jnp.bfloat16):
        return (scale * jax.random.normal(k, shape, jnp.float32)).astype(dtype)

    keys = jax.random.split(key, 2 + depth)
    emb = normal(keys[0], (vocab_size, dim))
    emb = emb.at[0].set(0)                     # padding_idx=0 -> zero row

    layers = []
    for layer_idx in range(depth):
        lk = jax.random.split(keys[2 + layer_idx], 4)
        layers.append(dict(
            ln1_g=jnp.ones((dim,), jnp.float32),
            ln1_b=jnp.zeros((dim,), jnp.float32),
            w_qkv=normal(lk[0], (dim, 3 * dim)),
            b_qkv=jnp.zeros((3 * dim,), jnp.float32),
            wo_h=normal(lk[1], (dim, dim)).reshape(heads, dh, dim),  # head-major Wo
            bo=jnp.zeros((dim,), jnp.float32),
            ln2_g=jnp.ones((dim,), jnp.float32),
            ln2_b=jnp.zeros((dim,), jnp.float32),
            w1=normal(lk[2], (dim, 4 * dim)),
            b1=jnp.zeros((4 * dim,), jnp.float32),
            w2=normal(lk[3], (4 * dim, dim)),
            b2=jnp.zeros((dim,), jnp.float32),
        ))

    final_w = normal(keys[1], (dim, n_class), dtype=jnp.float32)
    final_b = jnp.zeros((n_class,), jnp.float32)

    return dict(emb=emb, layers=layers, final_w=final_w, final_b=final_b,
                n_vec=n_vec, heads=heads, dim=dim)


# ---------------------------------------------------------------------------
# Forward pass (glue in plain JAX; all hot paths are Pallas kernels)
# ---------------------------------------------------------------------------
def reformer_model_forward(tokens, params):
    batch, length = tokens.shape
    seq = params["n_vec"]
    dim = params["dim"]
    heads = params["heads"]

    # pad sequence with token 0 (padding_idx -> zero embedding row)
    tokens = jnp.pad(tokens, ((0, 0), (0, seq - length)))
    # TODO(synk): embedding gather kept in JAX (needs DMA-gather to express in Pallas).
    x = jnp.take(params["emb"], tokens, axis=0)          # (B, S, D) bf16
    x2d = x.reshape(batch * seq, dim)

    for layer in params["layers"]:
        # attention sub-block: fused LN+QKV (head-major out), flash causal
        # attention fused with Wo projection + bias + residual.
        q, k, v = pallas_ln_qkv(x2d, layer["ln1_g"], layer["ln1_b"],
                                layer["w_qkv"], layer["b_qkv"], heads)
        x2d = pallas_flash_causal_attention_wo(q, k, v, layer["wo_h"], layer["bo"],
                                               x2d, batch, seq)
        # feed-forward sub-block: LN + W1 + GELU + W2 + residual, one kernel.
        x2d = pallas_ffn(x2d, layer["ln2_g"], layer["ln2_b"],
                         layer["w1"], layer["b1"], layer["w2"], layer["b2"])

    # pooling == 'avg' (matches reference: mean over the padded length).
    pooled = jnp.mean(x2d.reshape(batch, seq, dim).astype(jnp.float32), axis=1)
    # Final (B, D) x (D, n_class) matmul is launch-overhead dominated: plain JAX.
    return pooled @ params["final_w"] + params["final_b"]


# ---------------------------------------------------------------------------
if __name__ == "__main__":
    VOCAB, DIM, HEADS, DEPTH, N_VEC, N_CLASS = 32, 32, 2, 2, 8, 4
    B, SEQ = 2, 8

    key = jax.random.PRNGKey(0)
    pkey, xkey = jax.random.split(key)
    params = init_params(pkey, VOCAB, DIM, HEADS, DEPTH, N_VEC, N_CLASS)

    tokens = jax.random.randint(xkey, (B, SEQ), minval=1, maxval=VOCAB,
                                dtype=jnp.int32)

    out = reformer_model_forward(tokens, params)
    out = jax.block_until_ready(out)
    assert out.shape == (B, N_CLASS) and out.dtype == jnp.float32
    assert bool(jnp.all(jnp.isfinite(out)))
    print("KERNEL_OK")
</pallas_src>

<mosaic_0001>
module attributes {stable_mosaic.version = 11 : i64} {
  func.func @_ln_qkv_kernel(%arg0: i32, %arg1: memref<256x32xbf16, #tpu.memory_space<vmem>>, %arg2: memref<1x32xf32, #tpu.memory_space<vmem>>, %arg3: memref<1x32xf32, #tpu.memory_space<vmem>>, %arg4: memref<32x96xbf16, #tpu.memory_space<vmem>>, %arg5: memref<1x96xf32, #tpu.memory_space<vmem>>, %arg6: memref<2x256x16xbf16, #tpu.memory_space<vmem>>, %arg7: memref<2x256x16xbf16, #tpu.memory_space<vmem>>, %arg8: memref<2x256x16xbf16, #tpu.memory_space<vmem>>) attributes {dimension_semantics = [#tpu.dimension_semantics<parallel>], iteration_bounds = array<i64: 1>, scalar_prefetch = 0 : i64, scratch_operands = 0 : i64, tpu.core_type = #tpu.core_type<tc>, window_params = [{transform_indices = @transform_0, window_bounds = array<i64: 256, 32>}, {pipeline_mode = #tpu.pipeline_mode<synchronous>, transform_indices = @transform_1, window_bounds = array<i64: 1, 32>}, {pipeline_mode = #tpu.pipeline_mode<synchronous>, transform_indices = @transform_2, window_bounds = array<i64: 1, 32>}, {pipeline_mode = #tpu.pipeline_mode<synchronous>, transform_indices = @transform_3, window_bounds = array<i64: 32, 96>}, {pipeline_mode = #tpu.pipeline_mode<synchronous>, transform_indices = @transform_4, window_bounds = array<i64: 1, 96>}, {transform_indices = @transform_5, window_bounds = array<i64: 2, 256, 16>}, {transform_indices = @transform_6, window_bounds = array<i64: 2, 256, 16>}, {transform_indices = @transform_7, window_bounds = array<i64: 2, 256, 16>}]} {
    %c0 = arith.constant 0 : index
    %c0_0 = arith.constant 0 : index
    %0 = vector.load %arg1[%c0, %c0_0] : memref<256x32xbf16, #tpu.memory_space<vmem>>, vector<256x32xbf16>
    %1 = arith.extf %0 : vector<256x32xbf16> to vector<256x32xf32>
    %cst = arith.constant dense<0.000000e+00> : vector<256xf32>
    %2 = vector.multi_reduction <add>, %1, %cst [1] : vector<256x32xf32> to vector<256xf32>
    %3 = vector.shape_cast %2 : vector<256xf32> to vector<256x1xf32>
    %cst_1 = arith.constant 3.200000e+01 : f32
    %4 = vector.broadcast %cst_1 : f32 to vector<256x1xf32>
    %5 = arith.divf %3, %4 : vector<256x1xf32>
    %6 = vector.broadcast %5 : vector<256x1xf32> to vector<256x32xf32>
    %7 = arith.subf %1, %6 : vector<256x32xf32>
    %8 = arith.mulf %7, %7 : vector<256x32xf32>
    %cst_2 = arith.constant dense<0.000000e+00> : vector<256xf32>
    %9 = vector.multi_reduction <add>, %8, %cst_2 [1] : vector<256x32xf32> to vector<256xf32>
    %10 = vector.shape_cast %9 : vector<256xf32> to vector<256x1xf32>
    %cst_3 = arith.constant 3.200000e+01 : f32
    %11 = vector.broadcast %cst_3 : f32 to vector<256x1xf32>
    %12 = arith.divf %10, %11 : vector<256x1xf32>
    %13 = vector.broadcast %5 : vector<256x1xf32> to vector<256x32xf32>
    %14 = arith.subf %1, %13 : vector<256x32xf32>
    %cst_4 = arith.constant 9.99999974E-6 : f32
    %15 = vector.broadcast %cst_4 : f32 to vector<256x1xf32>
    %16 = arith.addf %12, %15 : vector<256x1xf32>
    %17 = math.rsqrt %16 : vector<256x1xf32>
    %18 = vector.broadcast %17 : vector<256x1xf32> to vector<256x32xf32>
    %19 = arith.mulf %14, %18 : vector<256x32xf32>
    %c0_5 = arith.constant 0 : index
    %c0_6 = arith.constant 0 : index
    %20 = vector.load %arg2[%c0_5, %c0_6] : memref<1x32xf32, #tpu.memory_space<vmem>>, vector<1x32xf32>
    %21 = vector.broadcast %20 : vector<1x32xf32> to vector<256x32xf32>
    %22 = arith.mulf %19, %21 : vector<256x32xf32>
    %c0_7 = arith.constant 0 : index
    %c0_8 = arith.constant 0 : index
    %23 = vector.load %arg3[%c0_7, %c0_8] : memref<1x32xf32, #tpu.memory_space<vmem>>, vector<1x32xf32>
    %24 = vector.broadcast %23 : vector<1x32xf32> to vector<256x32xf32>
    %25 = arith.addf %22, %24 : vector<256x32xf32>
    %26 = arith.truncf %25 : vector<256x32xf32> to vector<256x32xbf16>
    %c0_9 = arith.constant 0 : index
    %c0_10 = arith.constant 0 : index
    %27 = vector.load %arg4[%c0_9, %c0_10] : memref<32x96xbf16, #tpu.memory_space<vmem>>, vector<32x96xbf16>
    %cst_11 = arith.constant dense<0.000000e+00> : vector<256x96xf32>
    %28 = tpu.matmul %26, %27, %cst_11 {dimension_numbers = #tpu.dot_dimension_numbers<[1], [0], [0], [1], [0, 0, 1, 1], [], []>} : vector<256x32xbf16>, vector<32x96xbf16>, vector<256x96xf32> -> vector<256x96xf32>
    %c0_12 = arith.constant 0 : index
    %c0_13 = arith.constant 0 : index
    %29 = vector.load %arg5[%c0_12, %c0_13] : memref<1x96xf32, #tpu.memory_space<vmem>>, vector<1x96xf32>
    %30 = vector.broadcast %29 : vector<1x96xf32> to vector<256x96xf32>
    %31 = arith.addf %28, %30 : vector<256x96xf32>
    %32 = vector.extract_strided_slice %31 {offsets = [0, 0], sizes = [256, 16], strides = [1, 1]} : vector<256x96xf32> to vector<256x16xf32>
    %33 = arith.truncf %32 : vector<256x16xf32> to vector<256x16xbf16>
    %c0_14 = arith.constant 0 : index
    %c0_15 = arith.constant 0 : index
    %c0_16 = arith.constant 0 : index
    %34 = vector.load %arg6[%c0_14, %c0_15, %c0_16] : memref<2x256x16xbf16, #tpu.memory_space<vmem>>, vector<1x256x16xbf16>
    %35 = vector.shape_cast %34 : vector<1x256x16xbf16> to vector<256x16xbf16>
    %36 = vector.shape_cast %33 : vector<256x16xbf16> to vector<1x256x16xbf16>
    tpu.vector_store %arg6[%c0_14, %c0_15, %c0_16], %36 {strides = array<i32>} : memref<2x256x16xbf16, #tpu.memory_space<vmem>>, vector<1x256x16xbf16>,
    %37 = vector.extract_strided_slice %31 {offsets = [0, 32], sizes = [256, 16], strides = [1, 1]} : vector<256x96xf32> to vector<256x16xf32>
    %38 = arith.truncf %37 : vector<256x16xf32> to vector<256x16xbf16>
    %c0_17 = arith.constant 0 : index
    %c0_18 = arith.constant 0 : index
    %c0_19 = arith.constant 0 : index
    %39 = vector.load %arg7[%c0_17, %c0_18, %c0_19] : memref<2x256x16xbf16, #tpu.memory_space<vmem>>, vector<1x256x16xbf16>
    %40 = vector.shape_cast %39 : vector<1x256x16xbf16> to vector<256x16xbf16>
    %41 = vector.shape_cast %38 : vector<256x16xbf16> to vector<1x256x16xbf16>
    tpu.vector_store %arg7[%c0_17, %c0_18, %c0_19], %41 {strides = array<i32>} : memref<2x256x16xbf16, #tpu.memory_space<vmem>>, vector<1x256x16xbf16>,
    %42 = vector.extract_strided_slice %31 {offsets = [0, 64], sizes = [256, 16], strides = [1, 1]} : vector<256x96xf32> to vector<256x16xf32>
    %43 = arith.truncf %42 : vector<256x16xf32> to vector<256x16xbf16>
    %c0_20 = arith.constant 0 : index
    %c0_21 = arith.constant 0 : index
    %c0_22 = arith.constant 0 : index
    %44 = vector.load %arg8[%c0_20, %c0_21, %c0_22] : memref<2x256x16xbf16, #tpu.memory_space<vmem>>, vector<1x256x16xbf16>
    %45 = vector.shape_cast %44 : vector<1x256x16xbf16> to vector<256x16xbf16>
    %46 = vector.shape_cast %43 : vector<256x16xbf16> to vector<1x256x16xbf16>
    tpu.vector_store %arg8[%c0_20, %c0_21, %c0_22], %46 {strides = array<i32>} : memref<2x256x16xbf16, #tpu.memory_space<vmem>>, vector<1x256x16xbf16>,
    %47 = vector.extract_strided_slice %31 {offsets = [0, 16], sizes = [256, 16], strides = [1, 1]} : vector<256x96xf32> to vector<256x16xf32>
    %48 = arith.truncf %47 : vector<256x16xf32> to vector<256x16xbf16>
    %c1 = arith.constant 1 : index
    %c0_23 = arith.constant 0 : index
    %c0_24 = arith.constant 0 : index
    %49 = vector.load %arg6[%c1, %c0_23, %c0_24] : memref<2x256x16xbf16, #tpu.memory_space<vmem>>, vector<1x256x16xbf16>
    %50 = vector.shape_cast %49 : vector<1x256x16xbf16> to vector<256x16xbf16>
    %51 = vector.shape_cast %48 : vector<256x16xbf16> to vector<1x256x16xbf16>
    tpu.vector_store %arg6[%c1, %c0_23, %c0_24], %51 {strides = array<i32>} : memref<2x256x16xbf16, #tpu.memory_space<vmem>>, vector<1x256x16xbf16>,
    %52 = vector.extract_strided_slice %31 {offsets = [0, 48], sizes = [256, 16], strides = [1, 1]} : vector<256x96xf32> to vector<256x16xf32>
    %53 = arith.truncf %52 : vector<256x16xf32> to vector<256x16xbf16>
    %c1_25 = arith.constant 1 : index
    %c0_26 = arith.constant 0 : index
    %c0_27 = arith.constant 0 : index
    %54 = vector.load %arg7[%c1_25, %c0_26, %c0_27] : memref<2x256x16xbf16, #tpu.memory_space<vmem>>, vector<1x256x16xbf16>
    %55 = vector.shape_cast %54 : vector<1x256x16xbf16> to vector<256x16xbf16>
    %56 = vector.shape_cast %53 : vector<256x16xbf16> to vector<1x256x16xbf16>
    tpu.vector_store %arg7[%c1_25, %c0_26, %c0_27], %56 {strides = array<i32>} : memref<2x256x16xbf16, #tpu.memory_space<vmem>>, vector<1x256x16xbf16>,
    %57 = vector.extract_strided_slice %31 {offsets = [0, 80], sizes = [256, 16], strides = [1, 1]} : vector<256x96xf32> to vector<256x16xf32>
    %58 = arith.truncf %57 : vector<256x16xf32> to vector<256x16xbf16>
    %c1_28 = arith.constant 1 : index
    %c0_29 = arith.constant 0 : index
    %c0_30 = arith.constant 0 : index
    %59 = vector.load %arg8[%c1_28, %c0_29, %c0_30] : memref<2x256x16xbf16, #tpu.memory_space<vmem>>, vector<1x256x16xbf16>
    %60 = vector.shape_cast %59 : vector<1x256x16xbf16> to vector<256x16xbf16>
    %61 = vector.shape_cast %58 : vector<256x16xbf16> to vector<1x256x16xbf16>
    tpu.vector_store %arg8[%c1_28, %c0_29, %c0_30], %61 {strides = array<i32>} : memref<2x256x16xbf16, #tpu.memory_space<vmem>>, vector<1x256x16xbf16>,
    return
  }
  func.func @transform_0(%arg0: i32) -> (i32, i32) {
    %c0_i32 = arith.constant 0 : i32
    %c0_i32_0 = arith.constant 0 : i32
    return %arg0, %c0_i32 : i32, i32
  }
  func.func @transform_1(%arg0: i32) -> (i32, i32) {
    %c0_i32 = arith.constant 0 : i32
    %c0_i32_0 = arith.constant 0 : i32
    %c0_i32_1 = arith.constant 0 : i32
    return %c0_i32, %c0_i32_0 : i32, i32
  }
  func.func @transform_2(%arg0: i32) -> (i32, i32) {
    %c0_i32 = arith.constant 0 : i32
    %c0_i32_0 = arith.constant 0 : i32
    %c0_i32_1 = arith.constant 0 : i32
    return %c0_i32, %c0_i32_0 : i32, i32
  }
  func.func @transform_3(%arg0: i32) -> (i32, i32) {
    %c0_i32 = arith.constant 0 : i32
    %c0_i32_0 = arith.constant 0 : i32
    %c0_i32_1 = arith.constant 0 : i32
    return %c0_i32, %c0_i32_0 : i32, i32
  }
  func.func @transform_4(%arg0: i32) -> (i32, i32) {
    %c0_i32 = arith.constant 0 : i32
    %c0_i32_0 = arith.constant 0 : i32
    %c0_i32_1 = arith.constant 0 : i32
    return %c0_i32, %c0_i32_0 : i32, i32
  }
  func.func @transform_5(%arg0: i32) -> (i32, i32, i32) {
    %c0_i32 = arith.constant 0 : i32
    %c0_i32_0 = arith.constant 0 : i32
    %c0_i32_1 = arith.constant 0 : i32
    return %c0_i32, %arg0, %c0_i32_0 : i32, i32, i32
  }
  func.func @transform_6(%arg0: i32) -> (i32, i32, i32) {
    %c0_i32 = arith.constant 0 : i32
    %c0_i32_0 = arith.constant 0 : i32
    %c0_i32_1 = arith.constant 0 : i32
    return %c0_i32, %arg0, %c0_i32_0 : i32, i32, i32
  }
  func.func @transform_7(%arg0: i32) -> (i32, i32, i32) {
    %c0_i32 = arith.constant 0 : i32
    %c0_i32_0 = arith.constant 0 : i32
    %c0_i32_1 = arith.constant 0 : i32
    return %c0_i32, %arg0, %c0_i32_0 : i32, i32, i32
  }
}

</mosaic_0001>

<llo_original>
// kernel: tpu_custom_call.1
$region0: #{tpu_custom_call.1}
  #allocation0 [shape = 'u32[]', space=smem, size = 0x4, offset = 0x4, fixed_abs, tag = 'smem constant byte address 0x4 - core index']
  #allocation1 [shape = 'u32[144,128]{1,0:T(1,128)}', space=vmem, size = 0x12000, scoped, tag = 'internal scratch']
  %s0 = inlined_call_operand.vmem [shape: bf16[256,32], index: 0, kind: input, shape index: {}]
  %s1 = inlined_call_operand.vmem [shape: f32[1,32], index: 1, kind: input, shape index: {}]
  %s2 = inlined_call_operand.vmem [shape: f32[1,32], index: 2, kind: input, shape index: {}]
  %s3 = inlined_call_operand.vmem [shape: bf16[32,96], index: 3, kind: input, shape index: {}]
  %s4 = inlined_call_operand.vmem [shape: f32[1,96], index: 4, kind: input, shape index: {}]
  %s5 = inlined_call_operand.vmem [shape: bf16[2,256,16], index: 5, kind: output, shape index: {0}]
  %s6 = inlined_call_operand.vmem [shape: bf16[2,256,16], index: 6, kind: output, shape index: {1}]
  %s7 = inlined_call_operand.vmem [shape: bf16[2,256,16], index: 7, kind: output, shape index: {2}]
  %8 = xla_tuple %s5, %s6, %s7
  %s9 = sld [smem:[#allocation0]]
  $region46: #{tpu_custom_call.1} parent=0
    _
  %s11 = ssub.s32 1, %s9
  %s12 = scalar_select 0, %s11, %s9
  // Predicated region
  $region2: #{tpu_custom_call.1} parent=0 // pred_check
    _
  $region3: #{tpu_custom_call.1} parent=0 // pred_check_branch
    %14 = sbr.rel (0) target = $region5
  $region4: #{tpu_custom_call.1} parent=0 // pred_region
    _
  $region5: #{tpu_custom_call.1} parent=0 // pred_fallthru
    _
  // Predicated region
  $region6: #{tpu_custom_call.1} parent=0 // pred_check
    _
  $region7: #{tpu_custom_call.1} parent=0 // pred_check_branch
    %16 = sbr.rel (0) target = $region9
  $region8: #{tpu_custom_call.1} parent=0 // pred_region
    _
  $region9: #{tpu_custom_call.1} parent=0 // pred_fallthru
    _
  // Predicated region
  $region10: #{tpu_custom_call.1} parent=0 // pred_check
    _
  $region11: #{tpu_custom_call.1} parent=0 // pred_check_branch
    %18 = sbr.rel (0) target = $region13
  $region12: #{tpu_custom_call.1} parent=0 // pred_region
    _
  $region13: #{tpu_custom_call.1} parent=0 // pred_fallthru
    _
  // Predicated region
  $region14: #{tpu_custom_call.1} parent=0 // pred_check
    _
  $region15: #{tpu_custom_call.1} parent=0 // pred_check_branch
    %20 = sbr.rel (0) target = $region17
  $region16: #{tpu_custom_call.1} parent=0 // pred_region
    _
  $region17: #{tpu_custom_call.1} parent=0 // pred_fallthru
    _
  // Predicated region
  $region18: #{tpu_custom_call.1} parent=0 // pred_check
    _
  $region19: #{tpu_custom_call.1} parent=0 // pred_check_branch
    %22 = sbr.rel (0) target = $region21
  $region20: #{tpu_custom_call.1} parent=0 // pred_region
    _
  $region21: #{tpu_custom_call.1} parent=0 // pred_fallthru
    _
  %v24 = vld [vmem:[%s0] sm:$0xf]
  %v25 = vld [vmem:[%s0 + $0x4] sm:$0xf]
  %v26 = vld [vmem:[%s0 + $0x8] sm:$0xf]
  %v27 = vld [vmem:[%s0 + $0xc] sm:$0xf]
  %v28 = vld [vmem:[%s0 + $0x10] sm:$0xf]
  %v29 = vld [vmem:[%s0 + $0x14] sm:$0xf]
  %v30 = vld [vmem:[%s0 + $0x18] sm:$0xf]
  %v31 = vld [vmem:[%s0 + $0x1c] sm:$0xf]
  %v32 = vld [vmem:[%s0 + $0x20] sm:$0xf]
  %v33 = vld [vmem:[%s0 + $0x24] sm:$0xf]
  %v34 = vld [vmem:[%s0 + $0x28] sm:$0xf]
  %v35 = vld [vmem:[%s0 + $0x2c] sm:$0xf]
  %v36 = vld [vmem:[%s0 + $0x30] sm:$0xf]
  %v37 = vld [vmem:[%s0 + $0x34] sm:$0xf]
  %v38 = vld [vmem:[%s0 + $0x38] sm:$0xf]
  %v39 = vld [vmem:[%s0 + $0x3c] sm:$0xf]
  %v40 = vld [vmem:[%s0 + $0x40] sm:$0xf]
  %v41 = vld [vmem:[%s0 + $0x44] sm:$0xf]
  %v42 = vld [vmem:[%s0 + $0x48] sm:$0xf]
  %v43 = vld [vmem:[%s0 + $0x4c] sm:$0xf]
  %v44 = vld [vmem:[%s0 + $0x50] sm:$0xf]
  %v45 = vld [vmem:[%s0 + $0x54] sm:$0xf]
  %v46 = vld [vmem:[%s0 + $0x58] sm:$0xf]
  %v47 = vld [vmem:[%s0 + $0x5c] sm:$0xf]
  %v48 = vld [vmem:[%s0 + $0x60] sm:$0xf]
  %v49 = vld [vmem:[%s0 + $0x64] sm:$0xf]
  %v50 = vld [vmem:[%s0 + $0x68] sm:$0xf]
  %v51 = vld [vmem:[%s0 + $0x6c] sm:$0xf]
  %v52 = vld [vmem:[%s0 + $0x70] sm:$0xf]
  %v53 = vld [vmem:[%s0 + $0x74] sm:$0xf]
  %v54 = vld [vmem:[%s0 + $0x78] sm:$0xf]
  %v55 = vld [vmem:[%s0 + $0x7c] sm:$0xf]
  %v56 = vunpack.c.l.bf16 %v24
  %v57 = vunpack.c.l.bf16 %v25
  %v58 = vunpack.c.l.bf16 %v26
  %v59 = vunpack.c.l.bf16 %v27
  %v60 = vunpack.c.l.bf16 %v28
  %v61 = vunpack.c.l.bf16 %v29
  %v62 = vunpack.c.l.bf16 %v30
  %v63 = vunpack.c.l.bf16 %v31
  %v64 = vunpack.c.l.bf16 %v32
  %v65 = vunpack.c.l.bf16 %v33
  %v66 = vunpack.c.l.bf16 %v34
  %v67 = vunpack.c.l.bf16 %v35
  %v68 = vunpack.c.l.bf16 %v36
  %v69 = vunpack.c.l.bf16 %v37
  %v70 = vunpack.c.l.bf16 %v38
  %v71 = vunpack.c.l.bf16 %v39
  %v72 = vunpack.c.l.bf16 %v40
  %v73 = vunpack.c.l.bf16 %v41
  %v74 = vunpack.c.l.bf16 %v42
  %v75 = vunpack.c.l.bf16 %v43
  %v76 = vunpack.c.l.bf16 %v44
  %v77 = vunpack.c.l.bf16 %v45
  %v78 = vunpack.c.l.bf16 %v46
  %v79 = vunpack.c.l.bf16 %v47
  %v80 = vunpack.c.l.bf16 %v48
  %v81 = vunpack.c.l.bf16 %v49
  %v82 = vunpack.c.l.bf16 %v50
  %v83 = vunpack.c.l.bf16 %v51
  %v84 = vunpack.c.l.bf16 %v52
  %v85 = vunpack.c.l.bf16 %v53
  %v86 = vunpack.c.l.bf16 %v54
  %v87 = vunpack.c.l.bf16 %v55
  %vm88 = vcmask 261120
  %v89 = vsel %vm88, %v56, 0.0
  %90 = vadd.xlane.f32.xlu0 %v89
  %v91 = vpop.xlane.xlu0 %90
  %v92 = vsel %vm88, %v57, 0.0
  %93 = vadd.xlane.f32.xlu0 %v92
  %v94 = vpop.xlane.xlu0 %93
  %v95 = vsel %vm88, %v58, 0.0
  %96 = vadd.xlane.f32.xlu0 %v95
  %v97 = vpop.xlane.xlu0 %96
  %v98 = vsel %vm88, %v59, 0.0
  %99 = vadd.xlane.f32.xlu0 %v98
  %v100 = vpop.xlane.xlu0 %99
  %v101 = vsel %vm88, %v60, 0.0
  %102 = vadd.xlane.f32.xlu0 %v101
  %v103 = vpop.xlane.xlu0 %102
  %v104 = vsel %vm88, %v61, 0.0
  %105 = vadd.xlane.f32.xlu0 %v104
  %v106 = vpop.xlane.xlu0 %105
  %v107 = vsel %vm88, %v62, 0.0
  %108 = vadd.xlane.f32.xlu0 %v107
  %v109 = vpop.xlane.xlu0 %108
  %v110 = vsel %vm88, %v63, 0.0
  %111 = vadd.xlane.f32.xlu0 %v110
  %v112 = vpop.xlane.xlu0 %111
  %v113 = vsel %vm88, %v64, 0.0
  %114 = vadd.xlane.f32.xlu0 %v113
  %v115 = vpop.xlane.xlu0 %114
  %v116 = vsel %vm88, %v65, 0.0
  %117 = vadd.xlane.f32.xlu0 %v116
  %v118 = vpop.xlane.xlu0 %117
  %v119 = vsel %vm88, %v66, 0.0
  %120 = vadd.xlane.f32.xlu0 %v119
  %v121 = vpop.xlane.xlu0 %120
  %v122 = vsel %vm88, %v67, 0.0
  %123 = vadd.xlane.f32.xlu0 %v122
  %v124 = vpop.xlane.xlu0 %123
  %v125 = vsel %vm88, %v68, 0.0
  %126 = vadd.xlane.f32.xlu0 %v125
  %v127 = vpop.xlane.xlu0 %126
  %v128 = vsel %vm88, %v69, 0.0
  %129 = vadd.xlane.f32.xlu0 %v128
  %v130 = vpop.xlane.xlu0 %129
  %v131 = vsel %vm88, %v70, 0.0
  %132 = vadd.xlane.f32.xlu0 %v131
  %v133 = vpop.xlane.xlu0 %132
  %v134 = vsel %vm88, %v71, 0.0
  %135 = vadd.xlane.f32.xlu0 %v134
  %v136 = vpop.xlane.xlu0 %135
  %v137 = vsel %vm88, %v72, 0.0
  %138 = vadd.xlane.f32.xlu0 %v137
  %v139 = vpop.xlane.xlu0 %138
  %v140 = vsel %vm88, %v73, 0.0
  %141 = vadd.xlane.f32.xlu0 %v140
  %v142 = vpop.xlane.xlu0 %141
  %v143 = vsel %vm88, %v74, 0.0
  %144 = vadd.xlane.f32.xlu0 %v143
  %v145 = vpop.xlane.xlu0 %144
  %v146 = vsel %vm88, %v75, 0.0
  %147 = vadd.xlane.f32.xlu0 %v146
  %v148 = vpop.xlane.xlu0 %147
  %v149 = vsel %vm88, %v76, 0.0
  %150 = vadd.xlane.f32.xlu0 %v149
  %v151 = vpop.xlane.xlu0 %150
  %v152 = vsel %vm88, %v77, 0.0
  %153 = vadd.xlane.f32.xlu0 %v152
  %v154 = vpop.xlane.xlu0 %153
  %v155 = vsel %vm88, %v78, 0.0
  %156 = vadd.xlane.f32.xlu0 %v155
  %v157 = vpop.xlane.xlu0 %156
  %v158 = vsel %vm88, %v79, 0.0
  %159 = vadd.xlane.f32.xlu0 %v158
  %v160 = vpop.xlane.xlu0 %159
  %v161 = vsel %vm88, %v80, 0.0
  %162 = vadd.xlane.f32.xlu0 %v161
  %v163 = vpop.xlane.xlu0 %162
  %v164 = vsel %vm88, %v81, 0.0
  %165 = vadd.xlane.f32.xlu0 %v164
  %v166 = vpop.xlane.xlu0 %165
  %v167 = vsel %vm88, %v82, 0.0
  %168 = vadd.xlane.f32.xlu0 %v167
  %v169 = vpop.xlane.xlu0 %168
  %v170 = vsel %vm88, %v83, 0.0
  %171 = vadd.xlane.f32.xlu0 %v170
  %v172 = vpop.xlane.xlu0 %171
  %v173 = vsel %vm88, %v84, 0.0
  %174 = vadd.xlane.f32.xlu0 %v173
  %v175 = vpop.xlane.xlu0 %174
  %v176 = vsel %vm88, %v85, 0.0
  %177 = vadd.xlane.f32.xlu0 %v176
  %v178 = vpop.xlane.xlu0 %177
  %v179 = vsel %vm88, %v86, 0.0
  %180 = vadd.xlane.f32.xlu0 %v179
  %v181 = vpop.xlane.xlu0 %180
  %v182 = vsel %vm88, %v87, 0.0
  %183 = vadd.xlane.f32.xlu0 %v182
  %v184 = vpop.xlane.xlu0 %183
  %v185 = vrcp.pop 32.0
  %v186 = vmul.f32 %v91, %v185
  %v187 = vmul.f32 %v94, %v185
  %v188 = vmul.f32 %v97, %v185
  %v189 = vmul.f32 %v100, %v185
  %v190 = vmul.f32 %v103, %v185
  %v191 = vmul.f32 %v106, %v185
  %v192 = vmul.f32 %v109, %v185
  %v193 = vmul.f32 %v112, %v185
  %v194 = vmul.f32 %v115, %v185
  %v195 = vmul.f32 %v118, %v185
  %v196 = vmul.f32 %v121, %v185
  %v197 = vmul.f32 %v124, %v185
  %v198 = vmul.f32 %v127, %v185
  %v199 = vmul.f32 %v130, %v185
  %v200 = vmul.f32 %v133, %v185
  %v201 = vmul.f32 %v136, %v185
  %v202 = vmul.f32 %v139, %v185
  %v203 = vmul.f32 %v142, %v185
  %v204 = vmul.f32 %v145, %v185
  %v205 = vmul.f32 %v148, %v185
  %v206 = vmul.f32 %v151, %v185
  %v207 = vmul.f32 %v154, %v185
  %v208 = vmul.f32 %v157, %v185
  %v209 = vmul.f32 %v160, %v185
  %v210 = vmul.f32 %v163, %v185
  %v211 = vmul.f32 %v166, %v185
  %v212 = vmul.f32 %v169, %v185
  %v213 = vmul.f32 %v172, %v185
  %v214 = vmul.f32 %v175, %v185
  %v215 = vmul.f32 %v178, %v185
  %v216 = vmul.f32 %v181, %v185
  %v217 = vmul.f32 %v184, %v185
  %v218 = vsub.f32 %v56, %v186
  %v219 = vsub.f32 %v57, %v187
  %v220 = vsub.f32 %v58, %v188
  %v221 = vsub.f32 %v59, %v189
  %v222 = vsub.f32 %v60, %v190
  %v223 = vsub.f32 %v61, %v191
  %v224 = vsub.f32 %v62, %v192
  %v225 = vsub.f32 %v63, %v193
  %v226 = vsub.f32 %v64, %v194
  %v227 = vsub.f32 %v65, %v195
  %v228 = vsub.f32 %v66, %v196
  %v229 = vsub.f32 %v67, %v197
  %v230 = vsub.f32 %v68, %v198
  %v231 = vsub.f32 %v69, %v199
  %v232 = vsub.f32 %v70, %v200
  %v233 = vsub.f32 %v71, %v201
  %v234 = vsub.f32 %v72, %v202
  %v235 = vsub.f32 %v73, %v203
  %v236 = vsub.f32 %v74, %v204
  %v237 = vsub.f32 %v75, %v205
  %v238 = vsub.f32 %v76, %v206
  %v239 = vsub.f32 %v77, %v207
  %v240 = vsub.f32 %v78, %v208
  %v241 = vsub.f32 %v79, %v209
  %v242 = vsub.f32 %v80, %v210
  %v243 = vsub.f32 %v81, %v211
  %v244 = vsub.f32 %v82, %v212
  %v245 = vsub.f32 %v83, %v213
  %v246 = vsub.f32 %v84, %v214
  %v247 = vsub.f32 %v85, %v215
  %v248 = vsub.f32 %v86, %v216
  %v249 = vsub.f32 %v87, %v217
  %v250 = vmul.f32 %v218, %v218
  %v251 = vmul.f32 %v219, %v219
  %v252 = vmul.f32 %v220, %v220
  %v253 = vmul.f32 %v221, %v221
  %v254 = vmul.f32 %v222, %v222
  %v255 = vmul.f32 %v223, %v223
  %v256 = vmul.f32 %v224, %v224
  %v257 = vmul.f32 %v225, %v225
  %v258 = vmul.f32 %v226, %v226
  %v259 = vmul.f32 %v227, %v227
  %v260 = vmul.f32 %v228, %v228
  %v261 = vmul.f32 %v229, %v229
  %v262 = vmul.f32 %v230, %v230
  %v263 = vmul.f32 %v231, %v231
  %v264 = vmul.f32 %v232, %v232
  %v265 = vmul.f32 %v233, %v233
  %v266 = vmul.f32 %v234, %v234
  %v267 = vmul.f32 %v235, %v235
  %v268 = vmul.f32 %v236, %v236
  %v269 = vmul.f32 %v237, %v237
  %v270 = vmul.f32 %v238, %v238
  %v271 = vmul.f32 %v239, %v239
  %v272 = vmul.f32 %v240, %v240
  %v273 = vmul.f32 %v241, %v241
  %v274 = vmul.f32 %v242, %v242
  %v275 = vmul.f32 %v243, %v243
  %v276 = vmul.f32 %v244, %v244
  %v277 = vmul.f32 %v245, %v245
  %v278 = vmul.f32 %v246, %v246
  %v279 = vmul.f32 %v247, %v247
  %v280 = vmul.f32 %v248, %v248
  %v281 = vmul.f32 %v249, %v249
  %v282 = vsel %vm88, %v250, 0.0
  %283 = vadd.xlane.f32.xlu0 %v282
  %v284 = vpop.xlane.xlu0 %283
  %v285 = vsel %vm88, %v251, 0.0
  %286 = vadd.xlane.f32.xlu0 %v285
  %v287 = vpop.xlane.xlu0 %286
  %v288 = vsel %vm88, %v252, 0.0
  %289 = vadd.xlane.f32.xlu0 %v288
  %v290 = vpop.xlane.xlu0 %289
  %v291 = vsel %vm88, %v253, 0.0
  %292 = vadd.xlane.f32.xlu0 %v291
  %v293 = vpop.xlane.xlu0 %292
  %v294 = vsel %vm88, %v254, 0.0
  %295 = vadd.xlane.f32.xlu0 %v294
  %v296 = vpop.xlane.xlu0 %295
  %v297 = vsel %vm88, %v255, 0.0
  %298 = vadd.xlane.f32.xlu0 %v297
  %v299 = vpop.xlane.xlu0 %298
  %v300 = vsel %vm88, %v256, 0.0
  %301 = vadd.xlane.f32.xlu0 %v300
  %v302 = vpop.xlane.xlu0 %301
  %v303 = vsel %vm88, %v257, 0.0
  %304 = vadd.xlane.f32.xlu0 %v303
  %v305 = vpop.xlane.xlu0 %304
  %v306 = vsel %vm88, %v258, 0.0
  %307 = vadd.xlane.f32.xlu0 %v306
  %v308 = vpop.xlane.xlu0 %307
  %v309 = vsel %vm88, %v259, 0.0
  %310 = vadd.xlane.f32.xlu0 %v309
  %v311 = vpop.xlane.xlu0 %310
  %v312 = vsel %vm88, %v260, 0.0
  %313 = vadd.xlane.f32.xlu0 %v312
  %v314 = vpop.xlane.xlu0 %313
  %v315 = vsel %vm88, %v261, 0.0
  %316 = vadd.xlane.f32.xlu0 %v315
  %v317 = vpop.xlane.xlu0 %316
  %v318 = vsel %vm88, %v262, 0.0
  %319 = vadd.xlane.f32.xlu0 %v318
  %v320 = vpop.xlane.xlu0 %319
  %v321 = vsel %vm88, %v263, 0.0
  %322 = vadd.xlane.f32.xlu0 %v321
  %v323 = vpop.xlane.xlu0 %322
  %v324 = vsel %vm88, %v264, 0.0
  %325 = vadd.xlane.f32.xlu0 %v324
  %v326 = vpop.xlane.xlu0 %325
  %v327 = vsel %vm88, %v265, 0.0
  %328 = vadd.xlane.f32.xlu0 %v327
  %v329 = vpop.xlane.xlu0 %328
  %v330 = vsel %vm88, %v266, 0.0
  %331 = vadd.xlane.f32.xlu0 %v330
  %v332 = vpop.xlane.xlu0 %331
  %v333 = vsel %vm88, %v267, 0.0
  %334 = vadd.xlane.f32.xlu0 %v333
  %v335 = vpop.xlane.xlu0 %334
  %v336 = vsel %vm88, %v268, 0.0
  %337 = vadd.xlane.f32.xlu0 %v336
  %v338 = vpop.xlane.xlu0 %337
  %v339 = vsel %vm88, %v269, 0.0
  %340 = vadd.xlane.f32.xlu0 %v339
  %v341 = vpop.xlane.xlu0 %340
  %v342 = vsel %vm88, %v270, 0.0
  %343 = vadd.xlane.f32.xlu0 %v342
  %v344 = vpop.xlane.xlu0 %343
  %v345 = vsel %vm88, %v271, 0.0
  %346 = vadd.xlane.f32.xlu0 %v345
  %v347 = vpop.xlane.xlu0 %346
  %v348 = vsel %vm88, %v272, 0.0
  %349 = vadd.xlane.f32.xlu0 %v348
  %v350 = vpop.xlane.xlu0 %349
  %v351 = vsel %vm88, %v273, 0.0
  %352 = vadd.xlane.f32.xlu0 %v351
  %v353 = vpop.xlane.xlu0 %352
  %v354 = vsel %vm88, %v274, 0.0
  %355 = vadd.xlane.f32.xlu0 %v354
  %v356 = vpop.xlane.xlu0 %355
  %v357 = vsel %vm88, %v275, 0.0
  %358 = vadd.xlane.f32.xlu0 %v357
  %v359 = vpop.xlane.xlu0 %358
  %v360 = vsel %vm88, %v276, 0.0
  %361 = vadd.xlane.f32.xlu0 %v360
  %v362 = vpop.xlane.xlu0 %361
  %v363 = vsel %vm88, %v277, 0.0
  %364 = vadd.xlane.f32.xlu0 %v363
  %v365 = vpop.xlane.xlu0 %364
  %v366 = vsel %vm88, %v278, 0.0
  %367 = vadd.xlane.f32.xlu0 %v366
  %v368 = vpop.xlane.xlu0 %367
  %v369 = vsel %vm88, %v279, 0.0
  %370 = vadd.xlane.f32.xlu0 %v369
  %v371 = vpop.xlane.xlu0 %370
  %v372 = vsel %vm88, %v280, 0.0
  %373 = vadd.xlane.f32.xlu0 %v372
  %v374 = vpop.xlane.xlu0 %373
  %v375 = vsel %vm88, %v281, 0.0
  %376 = vadd.xlane.f32.xlu0 %v375
  %v377 = vpop.xlane.xlu0 %376
  %v378 = vmul.f32 %v284, %v185
  %v379 = vmul.f32 %v287, %v185
  %v380 = vmul.f32 %v290, %v185
  %v381 = vmul.f32 %v293, %v185
  %v382 = vmul.f32 %v296, %v185
  %v383 = vmul.f32 %v299, %v185
  %v384 = vmul.f32 %v302, %v185
  %v385 = vmul.f32 %v305, %v185
  %v386 = vmul.f32 %v308, %v185
  %v387 = vmul.f32 %v311, %v185
  %v388 = vmul.f32 %v314, %v185
  %v389 = vmul.f32 %v317, %v185
  %v390 = vmul.f32 %v320, %v185
  %v391 = vmul.f32 %v323, %v185
  %v392 = vmul.f32 %v326, %v185
  %v393 = vmul.f32 %v329, %v185
  %v394 = vmul.f32 %v332, %v185
  %v395 = vmul.f32 %v335, %v185
  %v396 = vmul.f32 %v338, %v185
  %v397 = vmul.f32 %v341, %v185
  %v398 = vmul.f32 %v344, %v185
  %v399 = vmul.f32 %v347, %v185
  %v400 = vmul.f32 %v350, %v185
  %v401 = vmul.f32 %v353, %v185
  %v402 = vmul.f32 %v356, %v185
  %v403 = vmul.f32 %v359, %v185
  %v404 = vmul.f32 %v362, %v185
  %v405 = vmul.f32 %v365, %v185
  %v406 = vmul.f32 %v368, %v185
  %v407 = vmul.f32 %v371, %v185
  %v408 = vmul.f32 %v374, %v185
  %v409 = vmul.f32 %v377, %v185
  %v410 = vadd.f32 %v378, 1e-05
  %v411 = vadd.f32 %v379, 1e-05
  %v412 = vadd.f32 %v380, 1e-05
  %v413 = vadd.f32 %v381, 1e-05
  %v414 = vadd.f32 %v382, 1e-05
  %v415 = vadd.f32 %v383, 1e-05
  %v416 = vadd.f32 %v384, 1e-05
  %v417 = vadd.f32 %v385, 1e-05
  %v418 = vadd.f32 %v386, 1e-05
  %v419 = vadd.f32 %v387, 1e-05
  %v420 = vadd.f32 %v388, 1e-05
  %v421 = vadd.f32 %v389, 1e-05
  %v422 = vadd.f32 %v390, 1e-05
  %v423 = vadd.f32 %v391, 1e-05
  %v424 = vadd.f32 %v392, 1e-05
  %v425 = vadd.f32 %v393, 1e-05
  %v426 = vadd.f32 %v394, 1e-05
  %v427 = vadd.f32 %v395, 1e-05
  %v428 = vadd.f32 %v396, 1e-05
  %v429 = vadd.f32 %v397, 1e-05
  %v430 = vadd.f32 %v398, 1e-05
  %v431 = vadd.f32 %v399, 1e-05
  %v432 = vadd.f32 %v400, 1e-05
  %v433 = vadd.f32 %v401, 1e-05
  %v434 = vadd.f32 %v402, 1e-05
  %v435 = vadd.f32 %v403, 1e-05
  %v436 = vadd.f32 %v404, 1e-05
  %v437 = vadd.f32 %v405, 1e-05
  %v438 = vadd.f32 %v406, 1e-05
  %v439 = vadd.f32 %v407, 1e-05
  %v440 = vadd.f32 %v408, 1e-05
  %v441 = vadd.f32 %v409, 1e-05
  %v442 = vrsqrt.pop %v410
  %v443 = vrsqrt.pop %v411
  %v444 = vrsqrt.pop %v412
  %v445 = vrsqrt.pop %v413
  %v446 = vrsqrt.pop %v414
  %v447 = vrsqrt.pop %v415
  %v448 = vrsqrt.pop %v416
  %v449 = vrsqrt.pop %v417
  %v450 = vrsqrt.pop %v418
  %v451 = vrsqrt.pop %v419
  %v452 = vrsqrt.pop %v420
  %v453 = vrsqrt.pop %v421
  %v454 = vrsqrt.pop %v422
  %v455 = vrsqrt.pop %v423
  %v456 = vrsqrt.pop %v424
  %v457 = vrsqrt.pop %v425
  %v458 = vrsqrt.pop %v426
  %v459 = vrsqrt.pop %v427
  %v460 = vrsqrt.pop %v428
  %v461 = vrsqrt.pop %v429
  %v462 = vrsqrt.pop %v430
  %v463 = vrsqrt.pop %v431
  %v464 = vrsqrt.pop %v432
  %v465 = vrsqrt.pop %v433
  %v466 = vrsqrt.pop %v434
  %v467 = vrsqrt.pop %v435
  %v468 = vrsqrt.pop %v436
  %v469 = vrsqrt.pop %v437
  %v470 = vrsqrt.pop %v438
  %v471 = vrsqrt.pop %v439
  %v472 = vrsqrt.pop %v440
  %v473 = vrsqrt.pop %v441
  %v474 = vmul.f32 %v218, %v442
  %v475 = vmul.f32 %v219, %v443
  %v476 = vmul.f32 %v220, %v444
  %v477 = vmul.f32 %v221, %v445
  %v478 = vmul.f32 %v222, %v446
  %v479 = vmul.f32 %v223, %v447
  %v480 = vmul.f32 %v224, %v448
  %v481 = vmul.f32 %v225, %v449
  %v482 = vmul.f32 %v226, %v450
  %v483 = vmul.f32 %v227, %v451
  %v484 = vmul.f32 %v228, %v452
  %v485 = vmul.f32 %v229, %v453
  %v486 = vmul.f32 %v230, %v454
  %v487 = vmul.f32 %v231, %v455
  %v488 = vmul.f32 %v232, %v456
  %v489 = vmul.f32 %v233, %v457
  %v490 = vmul.f32 %v234, %v458
  %v491 = vmul.f32 %v235, %v459
  %v492 = vmul.f32 %v236, %v460
  %v493 = vmul.f32 %v237, %v461
  %v494 = vmul.f32 %v238, %v462
  %v495 = vmul.f32 %v239, %v463
  %v496 = vmul.f32 %v240, %v464
  %v497 = vmul.f32 %v241, %v465
  %v498 = vmul.f32 %v242, %v466
  %v499 = vmul.f32 %v243, %v467
  %v500 = vmul.f32 %v244, %v468
  %v501 = vmul.f32 %v245, %v469
  %v502 = vmul.f32 %v246, %v470
  %v503 = vmul.f32 %v247, %v471
  %v504 = vmul.f32 %v248, %v472
  %v505 = vmul.f32 %v249, %v473
  %v506 = vld [vmem:[%s1] sm:$0x1]
  %v508 = vlaneseq
  %v509 = vshrl.u32 %v508, 7
  %v510 = vsub.s32 0, %v509
  %v511 = vrot.slane %v506, %v510
  %v513 = vmul.f32 %v474, %v511
  %v514 = vmul.f32 %v475, %v511
  %v515 = vmul.f32 %v476, %v511
  %v516 = vmul.f32 %v477, %v511
  %v517 = vmul.f32 %v478, %v511
  %v518 = vmul.f32 %v479, %v511
  %v519 = vmul.f32 %v480, %v511
  %v520 = vmul.f32 %v481, %v511
  %v521 = vmul.f32 %v482, %v511
  %v522 = vmul.f32 %v483, %v511
  %v523 = vmul.f32 %v484, %v511
  %v524 = vmul.f32 %v485, %v511
  %v525 = vmul.f32 %v486, %v511
  %v526 = vmul.f32 %v487, %v511
  %v527 = vmul.f32 %v488, %v511
  %v528 = vmul.f32 %v489, %v511
  %v529 = vmul.f32 %v490, %v511
  %v530 = vmul.f32 %v491, %v511
  %v531 = vmul.f32 %v492, %v511
  %v532 = vmul.f32 %v493, %v511
  %v533 = vmul.f32 %v494, %v511
  %v534 = vmul.f32 %v495, %v511
  %v535 = vmul.f32 %v496, %v511
  %v536 = vmul.f32 %v497, %v511
  %v537 = vmul.f32 %v498, %v511
  %v538 = vmul.f32 %v499, %v511
  %v539 = vmul.f32 %v500, %v511
  %v540 = vmul.f32 %v501, %v511
  %v541 = vmul.f32 %v502, %v511
  %v542 = vmul.f32 %v503, %v511
  %v543 = vmul.f32 %v504, %v511
  %v544 = vmul.f32 %v505, %v511
  %v545 = vld [vmem:[%s2] sm:$0x1]
  %v547 = vlaneseq
  %v548 = vshrl.u32 %v547, 7
  %v549 = vsub.s32 0, %v548
  %v550 = vrot.slane %v545, %v549
  %v552 = vadd.f32 %v513, %v550
  %v553 = vadd.f32 %v514, %v550
  %v554 = vadd.f32 %v515, %v550
  %v555 = vadd.f32 %v516, %v550
  %v556 = vadd.f32 %v517, %v550
  %v557 = vadd.f32 %v518, %v550
  %v558 = vadd.f32 %v519, %v550
  %v559 = vadd.f32 %v520, %v550
  %v560 = vadd.f32 %v521, %v550
  %v561 = vadd.f32 %v522, %v550
  %v562 = vadd.f32 %v523, %v550
  %v563 = vadd.f32 %v524, %v550
  %v564 = vadd.f32 %v525, %v550
  %v565 = vadd.f32 %v526, %v550
  %v566 = vadd.f32 %v527, %v550
  %v567 = vadd.f32 %v528, %v550
  %v568 = vadd.f32 %v529, %v550
  %v569 = vadd.f32 %v530, %v550
  %v570 = vadd.f32 %v531, %v550
  %v571 = vadd.f32 %v532, %v550
  %v572 = vadd.f32 %v533, %v550
  %v573 = vadd.f32 %v534, %v550
  %v574 = vadd.f32 %v535, %v550
  %v575 = vadd.f32 %v536, %v550
  %v576 = vadd.f32 %v537, %v550
  %v577 = vadd.f32 %v538, %v550
  %v578 = vadd.f32 %v539, %v550
  %v579 = vadd.f32 %v540, %v550
  %v580 = vadd.f32 %v541, %v550
  %v581 = vadd.f32 %v542, %v550
  %v582 = vadd.f32 %v543, %v550
  %v583 = vadd.f32 %v544, %v550
  %v584 = vpack.c.bf16 %v553, %v552
  %v585 = vpack.c.bf16 %v555, %v554
  %v586 = vpack.c.bf16 %v557, %v556
  %v587 = vpack.c.bf16 %v559, %v558
  %v588 = vpack.c.bf16 %v561, %v560
  %v589 = vpack.c.bf16 %v563, %v562
  %v590 = vpack.c.bf16 %v565, %v564
  %v591 = vpack.c.bf16 %v567, %v566
  %v592 = vpack.c.bf16 %v569, %v568
  %v593 = vpack.c.bf16 %v571, %v570
  %v594 = vpack.c.bf16 %v573, %v572
  %v595 = vpack.c.bf16 %v575, %v574
  %v596 = vpack.c.bf16 %v577, %v576
  %v597 = vpack.c.bf16 %v579, %v578
  %v598 = vpack.c.bf16 %v581, %v580
  %v599 = vpack.c.bf16 %v583, %v582
  %v600 = vld [vmem:[%s3] sm:$0xf]
  %v601 = vld [vmem:[%s3 + $0x4] sm:$0xf]
  %v602 = vld [vmem:[%s3 + $0x8] sm:$0xf]
  %v603 = vld [vmem:[%s3 + $0xc] sm:$0xf]
  %v604 = vld [vmem:[%s4] sm:$0x1]
  %v606 = vlaneseq
  %v607 = vshrl.u32 %v606, 7
  %v608 = vsub.s32 0, %v607
  %v609 = vrot.slane %v604, %v608
  %v615 = vunpack.c.l.b16 %v600
  %v616 = vunpack.c.l.b16 %v601
  %v617 = vunpack.c.l.b16 %v602
  %v618 = vunpack.c.l.b16 %v603
  %v619 = vpack.c.b16 %v616, %v615
  %v620 = vpack.c.b16 %v618, %v617
  %v624 = vsel %vm88, %v584, 0
  %v627 = vsel %vm88, %v585, 0
  %v630 = vsel %vm88, %v586, 0
  %v633 = vsel %vm88, %v587, 0
  %v636 = vsel %vm88, %v588, 0
  %v639 = vsel %vm88, %v589, 0
  %v642 = vsel %vm88, %v590, 0
  %v645 = vsel %vm88, %v591, 0
  %v648 = vsel %vm88, %v592, 0
  %v651 = vsel %vm88, %v593, 0
  %v654 = vsel %vm88, %v594, 0
  %v657 = vsel %vm88, %v595, 0
  %v660 = vsel %vm88, %v596, 0
  %v663 = vsel %vm88, %v597, 0
  %v666 = vsel %vm88, %v598, 0
  %v669 = vsel %vm88, %v599, 0
  %671 = vmatprep.subr.bf16.mxu0 0
  %672 = vmatpush1.bf16.msra.mxu0 0
  %673 = vmatprep.subr.bf16.mxu0 0
  %674 = vmatpush1.bf16.msra.mxu0 0
  %675 = vmatprep.subr.bf16.mxu0 0
  %676 = vmatpush1.bf16.msra.mxu0 0
  %677 = vmatprep.subr.bf16.mxu0 0
  %678 = vmatpush1.bf16.msra.mxu0 0
  %679 = vmatprep.subr.bf16.mxu0 0
  %680 = vmatpush1.bf16.msra.mxu0 0
  %681 = vmatprep.subr.bf16.mxu0 0
  %682 = vmatpush1.bf16.msra.mxu0 0
  %683 = vmatprep.subr.bf16.mxu0 0
  %684 = vmatpush1.bf16.msra.mxu0 %v620
  %685 = vmatprep.subr.bf16.mxu0 0
  %686 = vmatpush1.bf16.msra.mxu0 %v619
  %687 = vmatprep.subr.bf16.mxu0 0
  %688 = vmatpush2.bf16.msra.mxu0 0
  %689 = vmatprep.subr.bf16.mxu0 0
  %690 = vmatpush2.bf16.msra.mxu0 0
  %691 = vmatprep.subr.bf16.mxu0 0
  %692 = vmatpush2.bf16.msra.mxu0 0
  %693 = vmatprep.subr.bf16.mxu0 0
  %694 = vmatpush2.bf16.msra.mxu0 0
  %695 = vmatprep.subr.bf16.mxu0 0
  %696 = vmatpush2.bf16.msra.mxu0 0
  %697 = vmatprep.subr.bf16.mxu0 0
  %698 = vmatpush2.bf16.msra.mxu0 0
  %699 = vmatprep.subr.bf16.mxu0 0
  %700 = vmatpush2.bf16.msra.mxu0 0
  %701 = vmatprep.subr.bf16.mxu0 0
  %702 = vmatpush2.bf16.msra.mxu0 0
  %703 = vmatprep.mubr.bf16.mxu0 0
  %704 = vmatmul.mubr.bf16.gmra.mxu0 %v624
  %v705 = vpop.f32.mrf.mxu0
  %v706 = vadd.f32 %v609, %v705
  %v707 = vpop.f32.mrf.mxu0
  %v708 = vpop.f32.mrf.mxu0
  %v709 = vadd.f32 %v609, %v708
  %v710 = vpop.f32.mrf.mxu0
  %711 = vmatprep.mubr.bf16.mxu0 0
  %712 = vmatmul.mubr.bf16.gmra.mxu0 %v627
  %v713 = vpop.f32.mrf.mxu0
  %v714 = vadd.f32 %v609, %v713
  %v715 = vpop.f32.mrf.mxu0
  %v716 = vpop.f32.mrf.mxu0
  %v717 = vadd.f32 %v609, %v716
  %v718 = vpop.f32.mrf.mxu0
  %719 = vmatprep.mubr.bf16.mxu0 0
  %720 = vmatmul.mubr.bf16.gmra.mxu0 %v630
  %v721 = vpop.f32.mrf.mxu0
  %v722 = vadd.f32 %v609, %v721
  %v723 = vpop.f32.mrf.mxu0
  %v724 = vpop.f32.mrf.mxu0
  %v725 = vadd.f32 %v609, %v724
  %v726 = vpop.f32.mrf.mxu0
  %727 = vmatprep.mubr.bf16.mxu0 0
  %728 = vmatmul.mubr.bf16.gmra.mxu0 %v633
  %v729 = vpop.f32.mrf.mxu0
  %v730 = vadd.f32 %v609, %v729
  %v731 = vpop.f32.mrf.mxu0
  %v732 = vpop.f32.mrf.mxu0
  %v733 = vadd.f32 %v609, %v732
  %v734 = vpop.f32.mrf.mxu0
  %735 = vmatprep.mubr.bf16.mxu0 0
  %736 = vmatmul.mubr.bf16.gmra.mxu0 %v636
  %v737 = vpop.f32.mrf.mxu0
  %v738 = vadd.f32 %v609, %v737
  %v739 = vpop.f32.mrf.mxu0
  %v740 = vpop.f32.mrf.mxu0
  %v741 = vadd.f32 %v609, %v740
  %v742 = vpop.f32.mrf.mxu0
  %743 = vmatprep.mubr.bf16.mxu0 0
  %744 = vmatmul.mubr.bf16.gmra.mxu0 %v639
  %v745 = vpop.f32.mrf.mxu0
  %v746 = vadd.f32 %v609, %v745
  %v747 = vpop.f32.mrf.mxu0
  %v748 = vpop.f32.mrf.mxu0
  %v749 = vadd.f32 %v609, %v748
  %v750 = vpop.f32.mrf.mxu0
  %751 = vmatprep.mubr.bf16.mxu0 0
  %752 = vmatmul.mubr.bf16.gmra.mxu0 %v642
  %v753 = vpop.f32.mrf.mxu0
  %v754 = vadd.f32 %v609, %v753
  %v755 = vpop.f32.mrf.mxu0
  %v756 = vpop.f32.mrf.mxu0
  %v757 = vadd.f32 %v609, %v756
  %v758 = vpop.f32.mrf.mxu0
  %759 = vmatprep.mubr.bf16.mxu0 0
  %760 = vmatmul.mubr.bf16.gmra.mxu0 %v645
  %v761 = vpop.f32.mrf.mxu0
  %v762 = vadd.f32 %v609, %v761
  %v763 = vpop.f32.mrf.mxu0
  %v764 = vpop.f32.mrf.mxu0
  %v765 = vadd.f32 %v609, %v764
  %v766 = vpop.f32.mrf.mxu0
  %767 = vmatprep.mubr.bf16.mxu0 0
  %768 = vmatmul.mubr.bf16.gmra.mxu0 %v648
  %v769 = vpop.f32.mrf.mxu0
  %v770 = vadd.f32 %v609, %v769
  %v771 = vpop.f32.mrf.mxu0
  %v772 = vpop.f32.mrf.mxu0
  %v773 = vadd.f32 %v609, %v772
  %v774 = vpop.f32.mrf.mxu0
  %775 = vmatprep.mubr.bf16.mxu0 0
  %776 = vmatmul.mubr.bf16.gmra.mxu0 %v651
  %v777 = vpop.f32.mrf.mxu0
  %v778 = vadd.f32 %v609, %v777
  %v779 = vpop.f32.mrf.mxu0
  %v780 = vpop.f32.mrf.mxu0
  %v781 = vadd.f32 %v609, %v780
  %v782 = vpop.f32.mrf.mxu0
  %783 = vmatprep.mubr.bf16.mxu0 0
  %784 = vmatmul.mubr.bf16.gmra.mxu0 %v654
  %v785 = vpop.f32.mrf.mxu0
  %v786 = vadd.f32 %v609, %v785
  %v787 = vpop.f32.mrf.mxu0
  %v788 = vpop.f32.mrf.mxu0
  %v789 = vadd.f32 %v609, %v788
  %v790 = vpop.f32.mrf.mxu0
  %791 = vmatprep.mubr.bf16.mxu0 0
  %792 = vmatmul.mubr.bf16.gmra.mxu0 %v657
  %v793 = vpop.f32.mrf.mxu0
  %v794 = vadd.f32 %v609, %v793
  %v795 = vpop.f32.mrf.mxu0
  %v796 = vpop.f32.mrf.mxu0
  %v797 = vadd.f32 %v609, %v796
  %v798 = vpop.f32.mrf.mxu0
  %799 = vmatprep.mubr.bf16.mxu0 0
  %800 = vmatmul.mubr.bf16.gmra.mxu0 %v660
  %v801 = vpop.f32.mrf.mxu0
  %v802 = vadd.f32 %v609, %v801
  %v803 = vpop.f32.mrf.mxu0
  %v804 = vpop.f32.mrf.mxu0
  %v805 = vadd.f32 %v609, %v804
  %v806 = vpop.f32.mrf.mxu0
  %807 = vmatprep.mubr.bf16.mxu0 0
  %808 = vmatmul.mubr.bf16.gmra.mxu0 %v663
  %v809 = vpop.f32.mrf.mxu0
  %v810 = vadd.f32 %v609, %v809
  %v811 = vpop.f32.mrf.mxu0
  %v812 = vpop.f32.mrf.mxu0
  %v813 = vadd.f32 %v609, %v812
  %v814 = vpop.f32.mrf.mxu0
  %815 = vmatprep.mubr.bf16.mxu0 0
  %816 = vmatmul.mubr.bf16.gmra.mxu0 %v666
  %v817 = vpop.f32.mrf.mxu0
  %v818 = vadd.f32 %v609, %v817
  %v819 = vpop.f32.mrf.mxu0
  %v820 = vpop.f32.mrf.mxu0
  %v821 = vadd.f32 %v609, %v820
  %v822 = vpop.f32.mrf.mxu0
  %823 = vmatprep.mubr.bf16.mxu0 0
  %824 = vmatmul.mubr.bf16.gmra.mxu0 %v669
  %v825 = vpop.f32.mrf.mxu0
  %v826 = vadd.f32 %v609, %v825
  %v827 = vpop.f32.mrf.mxu0
  %v828 = vpop.f32.mrf.mxu0
  %v829 = vadd.f32 %v609, %v828
  %v830 = vpop.f32.mrf.mxu0
  %831 = vdwg.mxu0
  %v832 = vpack.c.bf16 %v709, %v706
  %v833 = vpack.c.bf16 %v717, %v714
  %v834 = vpack.c.bf16 %v725, %v722
  %v835 = vpack.c.bf16 %v733, %v730
  %v836 = vpack.c.bf16 %v741, %v738
  %v837 = vpack.c.bf16 %v749, %v746
  %v838 = vpack.c.bf16 %v757, %v754
  %v839 = vpack.c.bf16 %v765, %v762
  %v840 = vpack.c.bf16 %v773, %v770
  %v841 = vpack.c.bf16 %v781, %v778
  %v842 = vpack.c.bf16 %v789, %v786
  %v843 = vpack.c.bf16 %v797, %v794
  %v844 = vpack.c.bf16 %v805, %v802
  %v845 = vpack.c.bf16 %v813, %v810
  %v846 = vpack.c.bf16 %v821, %v818
  %v847 = vpack.c.bf16 %v829, %v826
  %v864 = vunpack.c.l.b16 %v832
  %v865 = vunpack.c.h.b16 %v832
  %v866 = vunpack.c.l.b16 %v833
  %v867 = vunpack.c.h.b16 %v833
  %v868 = vunpack.c.l.b16 %v834
  %v869 = vunpack.c.h.b16 %v834
  %v870 = vunpack.c.l.b16 %v835
  %v871 = vunpack.c.h.b16 %v835
  %v872 = vunpack.c.l.b16 %v836
  %v873 = vunpack.c.h.b16 %v836
  %v874 = vunpack.c.l.b16 %v837
  %v875 = vunpack.c.h.b16 %v837
  %v876 = vunpack.c.l.b16 %v838
  %v877 = vunpack.c.h.b16 %v838
  %v878 = vunpack.c.l.b16 %v839
  %v879 = vunpack.c.h.b16 %v839
  %v880 = vunpack.c.l.b16 %v840
  %v881 = vunpack.c.h.b16 %v840
  %v882 = vunpack.c.l.b16 %v841
  %v883 = vunpack.c.h.b16 %v841
  %v884 = vunpack.c.l.b16 %v842
  %v885 = vunpack.c.h.b16 %v842
  %v886 = vunpack.c.l.b16 %v843
  %v887 = vunpack.c.h.b16 %v843
  %v888 = vunpack.c.l.b16 %v844
  %v889 = vunpack.c.h.b16 %v844
  %v890 = vunpack.c.l.b16 %v845
  %v891 = vunpack.c.h.b16 %v845
  %v892 = vunpack.c.l.b16 %v846
  %v893 = vunpack.c.h.b16 %v846
  %v894 = vunpack.c.l.b16 %v847
  %v895 = vunpack.c.h.b16 %v847
  %v896 = vpack.c.b16 %v864, %v864
  %v897 = vpack.c.b16 %v865, %v865
  %v898 = vpack.c.b16 %v866, %v866
  %v899 = vpack.c.b16 %v867, %v867
  %v900 = vpack.c.b16 %v868, %v868
  %v901 = vpack.c.b16 %v869, %v869
  %v902 = vpack.c.b16 %v870, %v870
  %v903 = vpack.c.b16 %v871, %v871
  %v904 = vpack.c.b16 %v872, %v872
  %v905 = vpack.c.b16 %v873, %v873
  %v906 = vpack.c.b16 %v874, %v874
  %v907 = vpack.c.b16 %v875, %v875
  %v908 = vpack.c.b16 %v876, %v876
  %v909 = vpack.c.b16 %v877, %v877
  %v910 = vpack.c.b16 %v878, %v878
  %v911 = vpack.c.b16 %v879, %v879
  %v912 = vpack.c.b16 %v880, %v880
  %v913 = vpack.c.b16 %v881, %v881
  %v914 = vpack.c.b16 %v882, %v882
  %v915 = vpack.c.b16 %v883, %v883
  %v916 = vpack.c.b16 %v884, %v884
  %v917 = vpack.c.b16 %v885, %v885
  %v918 = vpack.c.b16 %v886, %v886
  %v919 = vpack.c.b16 %v887, %v887
  %v920 = vpack.c.b16 %v888, %v888
  %v921 = vpack.c.b16 %v889, %v889
  %v922 = vpack.c.b16 %v890, %v890
  %v923 = vpack.c.b16 %v891, %v891
  %v924 = vpack.c.b16 %v892, %v892
  %v925 = vpack.c.b16 %v893, %v893
  %v926 = vpack.c.b16 %v894, %v894
  %v927 = vpack.c.b16 %v895, %v895
  %vm960 = vcmask 125952
  %961 = vst.msk [vmem:[%s5] sm:$0xf] %vm960, %v896
  %962 = vst.msk [vmem:[%s5 + $0x4] sm:$0xf] %vm960, %v897
  %963 = vst.msk [vmem:[%s5 + $0x8] sm:$0xf] %vm960, %v898
  %964 = vst.msk [vmem:[%s5 + $0xc] sm:$0xf] %vm960, %v899
  %965 = vst.msk [vmem:[%s5 + $0x10] sm:$0xf] %vm960, %v900
  %966 = vst.msk [vmem:[%s5 + $0x14] sm:$0xf] %vm960, %v901
  %967 = vst.msk [vmem:[%s5 + $0x18] sm:$0xf] %vm960, %v902
  %968 = vst.msk [vmem:[%s5 + $0x1c] sm:$0xf] %vm960, %v903
  %969 = vst.msk [vmem:[%s5 + $0x20] sm:$0xf] %vm960, %v904
  %970 = vst.msk [vmem:[%s5 + $0x24] sm:$0xf] %vm960, %v905
  %971 = vst.msk [vmem:[%s5 + $0x28] sm:$0xf] %vm960, %v906
  %972 = vst.msk [vmem:[%s5 + $0x2c] sm:$0xf] %vm960, %v907
  %973 = vst.msk [vmem:[%s5 + $0x30] sm:$0xf] %vm960, %v908
  %974 = vst.msk [vmem:[%s5 + $0x34] sm:$0xf] %vm960, %v909
  %975 = vst.msk [vmem:[%s5 + $0x38] sm:$0xf] %vm960, %v910
  %976 = vst.msk [vmem:[%s5 + $0x3c] sm:$0xf] %vm960, %v911
  %977 = vst.msk [vmem:[%s5 + $0x40] sm:$0xf] %vm960, %v912
  %978 = vst.msk [vmem:[%s5 + $0x44] sm:$0xf] %vm960, %v913
  %979 = vst.msk [vmem:[%s5 + $0x48] sm:$0xf] %vm960, %v914
  %980 = vst.msk [vmem:[%s5 + $0x4c] sm:$0xf] %vm960, %v915
  %981 = vst.msk [vmem:[%s5 + $0x50] sm:$0xf] %vm960, %v916
  %982 = vst.msk [vmem:[%s5 + $0x54] sm:$0xf] %vm960, %v917
  %983 = vst.msk [vmem:[%s5 + $0x58] sm:$0xf] %vm960, %v918
  %984 = vst.msk [vmem:[%s5 + $0x5c] sm:$0xf] %vm960, %v919
  %985 = vst.msk [vmem:[%s5 + $0x60] sm:$0xf] %vm960, %v920
  %986 = vst.msk [vmem:[%s5 + $0x64] sm:$0xf] %vm960, %v921
  %987 = vst.msk [vmem:[%s5 + $0x68] sm:$0xf] %vm960, %v922
  %988 = vst.msk [vmem:[%s5 + $0x6c] sm:$0xf] %vm960, %v923
  %989 = vst.msk [vmem:[%s5 + $0x70] sm:$0xf] %vm960, %v924
  %990 = vst.msk [vmem:[%s5 + $0x74] sm:$0xf] %vm960, %v925
  %991 = vst.msk [vmem:[%s5 + $0x78] sm:$0xf] %vm960, %v926
  %992 = vst.msk [vmem:[%s5 + $0x7c] sm:$0xf] %vm960, %v927
  %993 = vrot.lane.b32.xlu0 %v896, 96
  %v994 = vpop.permute.xlu0 %993
  %995 = vrot.lane.b32.xlu0 %v897, 96
  %v996 = vpop.permute.xlu0 %995
  %997 = vrot.lane.b32.xlu0 %v898, 96
  %v998 = vpop.permute.xlu0 %997
  %999 = vrot.lane.b32.xlu0 %v899, 96
  %v1000 = vpop.permute.xlu0 %999
  %1001 = vrot.lane.b32.xlu0 %v900, 96
  %v1002 = vpop.permute.xlu0 %1001
  %1003 = vrot.lane.b32.xlu0 %v901, 96
  %v1004 = vpop.permute.xlu0 %1003
  %1005 = vrot.lane.b32.xlu0 %v902, 96
  %v1006 = vpop.permute.xlu0 %1005
  %1007 = vrot.lane.b32.xlu0 %v903, 96
  %v1008 = vpop.permute.xlu0 %1007
  %1009 = vrot.lane.b32.xlu0 %v904, 96
  %v1010 = vpop.permute.xlu0 %1009
  %1011 = vrot.lane.b32.xlu0 %v905, 96
  %v1012 = vpop.permute.xlu0 %1011
  %1013 = vrot.lane.b32.xlu0 %v906, 96
  %v1014 = vpop.permute.xlu0 %1013
  %1015 = vrot.lane.b32.xlu0 %v907, 96
  %v1016 = vpop.permute.xlu0 %1015
  %1017 = vrot.lane.b32.xlu0 %v908, 96
  %v1018 = vpop.permute.xlu0 %1017
  %1019 = vrot.lane.b32.xlu0 %v909, 96
  %v1020 = vpop.permute.xlu0 %1019
  %1021 = vrot.lane.b32.xlu0 %v910, 96
  %v1022 = vpop.permute.xlu0 %1021
  %1023 = vrot.lane.b32.xlu0 %v911, 96
  %v1024 = vpop.permute.xlu0 %1023
  %1025 = vrot.lane.b32.xlu0 %v912, 96
  %v1026 = vpop.permute.xlu0 %1025
  %1027 = vrot.lane.b32.xlu0 %v913, 96
  %v1028 = vpop.permute.xlu0 %1027
  %1029 = vrot.lane.b32.xlu0 %v914, 96
  %v1030 = vpop.permute.xlu0 %1029
  %1031 = vrot.lane.b32.xlu0 %v915, 96
  %v1032 = vpop.permute.xlu0 %1031
  %1033 = vrot.lane.b32.xlu0 %v916, 96
  %v1034 = vpop.permute.xlu0 %1033
  %1035 = vrot.lane.b32.xlu0 %v917, 96
  %v1036 = vpop.permute.xlu0 %1035
  %1037 = vrot.lane.b32.xlu0 %v918, 96
  %v1038 = vpop.permute.xlu0 %1037
  %1039 = vrot.lane.b32.xlu0 %v919, 96
  %v1040 = vpop.permute.xlu0 %1039
  %1041 = vrot.lane.b32.xlu0 %v920, 96
  %v1042 = vpop.permute.xlu0 %1041
  %1043 = vrot.lane.b32.xlu0 %v921, 96
  %v1044 = vpop.permute.xlu0 %1043
  %1045 = vrot.lane.b32.xlu0 %v922, 96
  %v1046 = vpop.permute.xlu0 %1045
  %1047 = vrot.lane.b32.xlu0 %v923, 96
  %v1048 = vpop.permute.xlu0 %1047
  %1049 = vrot.lane.b32.xlu0 %v924, 96
  %v1050 = vpop.permute.xlu0 %1049
  %1051 = vrot.lane.b32.xlu0 %v925, 96
  %v1052 = vpop.permute.xlu0 %1051
  %1053 = vrot.lane.b32.xlu0 %v926, 96
  %v1054 = vpop.permute.xlu0 %1053
  %1055 = vrot.lane.b32.xlu0 %v927, 96
  %v1056 = vpop.permute.xlu0 %1055
  %1089 = vst.msk [vmem:[%s6] sm:$0xf] %vm960, %v994
  %1090 = vst.msk [vmem:[%s6 + $0x4] sm:$0xf] %vm960, %v996
  %1091 = vst.msk [vmem:[%s6 + $0x8] sm:$0xf] %vm960, %v998
  %1092 = vst.msk [vmem:[%s6 + $0xc] sm:$0xf] %vm960, %v1000
  %1093 = vst.msk [vmem:[%s6 + $0x10] sm:$0xf] %vm960, %v1002
  %1094 = vst.msk [vmem:[%s6 + $0x14] sm:$0xf] %vm960, %v1004
  %1095 = vst.msk [vmem:[%s6 + $0x18] sm:$0xf] %vm960, %v1006
  %1096 = vst.msk [vmem:[%s6 + $0x1c] sm:$0xf] %vm960, %v1008
  %1097 = vst.msk [vmem:[%s6 + $0x20] sm:$0xf] %vm960, %v1010
  %1098 = vst.msk [vmem:[%s6 + $0x24] sm:$0xf] %vm960, %v1012
  %1099 = vst.msk [vmem:[%s6 + $0x28] sm:$0xf] %vm960, %v1014
  %1100 = vst.msk [vmem:[%s6 + $0x2c] sm:$0xf] %vm960, %v1016
  %1101 = vst.msk [vmem:[%s6 + $0x30] sm:$0xf] %vm960, %v1018
  %1102 = vst.msk [vmem:[%s6 + $0x34] sm:$0xf] %vm960, %v1020
  %1103 = vst.msk [vmem:[%s6 + $0x38] sm:$0xf] %vm960, %v1022
  %1104 = vst.msk [vmem:[%s6 + $0x3c] sm:$0xf] %vm960, %v1024
  %1105 = vst.msk [vmem:[%s6 + $0x40] sm:$0xf] %vm960, %v1026
  %1106 = vst.msk [vmem:[%s6 + $0x44] sm:$0xf] %vm960, %v1028
  %1107 = vst.msk [vmem:[%s6 + $0x48] sm:$0xf] %vm960, %v1030
  %1108 = vst.msk [vmem:[%s6 + $0x4c] sm:$0xf] %vm960, %v1032
  %1109 = vst.msk [vmem:[%s6 + $0x50] sm:$0xf] %vm960, %v1034
  %1110 = vst.msk [vmem:[%s6 + $0x54] sm:$0xf] %vm960, %v1036
  %1111 = vst.msk [vmem:[%s6 + $0x58] sm:$0xf] %vm960, %v1038
  %1112 = vst.msk [vmem:[%s6 + $0x5c] sm:$0xf] %vm960, %v1040
  %1113 = vst.msk [vmem:[%s6 + $0x60] sm:$0xf] %vm960, %v1042
  %1114 = vst.msk [vmem:[%s6 + $0x64] sm:$0xf] %vm960, %v1044
  %1115 = vst.msk [vmem:[%s6 + $0x68] sm:$0xf] %vm960, %v1046
  %1116 = vst.msk [vmem:[%s6 + $0x6c] sm:$0xf] %vm960, %v1048
  %1117 = vst.msk [vmem:[%s6 + $0x70] sm:$0xf] %vm960, %v1050
  %1118 = vst.msk [vmem:[%s6 + $0x74] sm:$0xf] %vm960, %v1052
  %1119 = vst.msk [vmem:[%s6 + $0x78] sm:$0xf] %vm960, %v1054
  %1120 = vst.msk [vmem:[%s6 + $0x7c] sm:$0xf] %vm960, %v1056
  %1121 = vrot.lane.b32.xlu0 %v896, 64
  %v1122 = vpop.permute.xlu0 %1121
  %1123 = vrot.lane.b32.xlu0 %v897, 64
  %v1124 = vpop.permute.xlu0 %1123
  %1125 = vrot.lane.b32.xlu0 %v898, 64
  %v1126 = vpop.permute.xlu0 %1125
  %1127 = vrot.lane.b32.xlu0 %v899, 64
  %v1128 = vpop.permute.xlu0 %1127
  %1129 = vrot.lane.b32.xlu0 %v900, 64
  %v1130 = vpop.permute.xlu0 %1129
  %1131 = vrot.lane.b32.xlu0 %v901, 64
  %v1132 = vpop.permute.xlu0 %1131
  %1133 = vrot.lane.b32.xlu0 %v902, 64
  %v1134 = vpop.permute.xlu0 %1133
  %1135 = vrot.lane.b32.xlu0 %v903, 64
  %v1136 = vpop.permute.xlu0 %1135
  %1137 = vrot.lane.b32.xlu0 %v904, 64
  %v1138 = vpop.permute.xlu0 %1137
  %1139 = vrot.lane.b32.xlu0 %v905, 64
  %v1140 = vpop.permute.xlu0 %1139
  %1141 = vrot.lane.b32.xlu0 %v906, 64
  %v1142 = vpop.permute.xlu0 %1141
  %1143 = vrot.lane.b32.xlu0 %v907, 64
  %v1144 = vpop.permute.xlu0 %1143
  %1145 = vrot.lane.b32.xlu0 %v908, 64
  %v1146 = vpop.permute.xlu0 %1145
  %1147 = vrot.lane.b32.xlu0 %v909, 64
  %v1148 = vpop.permute.xlu0 %1147
  %1149 = vrot.lane.b32.xlu0 %v910, 64
  %v1150 = vpop.permute.xlu0 %1149
  %1151 = vrot.lane.b32.xlu0 %v911, 64
  %v1152 = vpop.permute.xlu0 %1151
  %1153 = vrot.lane.b32.xlu0 %v912, 64
  %v1154 = vpop.permute.xlu0 %1153
  %1155 = vrot.lane.b32.xlu0 %v913, 64
  %v1156 = vpop.permute.xlu0 %1155
  %1157 = vrot.lane.b32.xlu0 %v914, 64
  %v1158 = vpop.permute.xlu0 %1157
  %1159 = vrot.lane.b32.xlu0 %v915, 64
  %v1160 = vpop.permute.xlu0 %1159
  %1161 = vrot.lane.b32.xlu0 %v916, 64
  %v1162 = vpop.permute.xlu0 %1161
  %1163 = vrot.lane.b32.xlu0 %v917, 64
  %v1164 = vpop.permute.xlu0 %1163
  %1165 = vrot.lane.b32.xlu0 %v918, 64
  %v1166 = vpop.permute.xlu0 %1165
  %1167 = vrot.lane.b32.xlu0 %v919, 64
  %v1168 = vpop.permute.xlu0 %1167
  %1169 = vrot.lane.b32.xlu0 %v920, 64
  %v1170 = vpop.permute.xlu0 %1169
  %1171 = vrot.lane.b32.xlu0 %v921, 64
  %v1172 = vpop.permute.xlu0 %1171
  %1173 = vrot.lane.b32.xlu0 %v922, 64
  %v1174 = vpop.permute.xlu0 %1173
  %1175 = vrot.lane.b32.xlu0 %v923, 64
  %v1176 = vpop.permute.xlu0 %1175
  %1177 = vrot.lane.b32.xlu0 %v924, 64
  %v1178 = vpop.permute.xlu0 %1177
  %1179 = vrot.lane.b32.xlu0 %v925, 64
  %v1180 = vpop.permute.xlu0 %1179
  %1181 = vrot.lane.b32.xlu0 %v926, 64
  %v1182 = vpop.permute.xlu0 %1181
  %1183 = vrot.lane.b32.xlu0 %v927, 64
  %v1184 = vpop.permute.xlu0 %1183
  %1217 = vst.msk [vmem:[%s7] sm:$0xf] %vm960, %v1122
  %1218 = vst.msk [vmem:[%s7 + $0x4] sm:$0xf] %vm960, %v1124
  %1219 = vst.msk [vmem:[%s7 + $0x8] sm:$0xf] %vm960, %v1126
  %1220 = vst.msk [vmem:[%s7 + $0xc] sm:$0xf] %vm960, %v1128
  %1221 = vst.msk [vmem:[%s7 + $0x10] sm:$0xf] %vm960, %v1130
  %1222 = vst.msk [vmem:[%s7 + $0x14] sm:$0xf] %vm960, %v1132
  %1223 = vst.msk [vmem:[%s7 + $0x18] sm:$0xf] %vm960, %v1134
  %1224 = vst.msk [vmem:[%s7 + $0x1c] sm:$0xf] %vm960, %v1136
  %1225 = vst.msk [vmem:[%s7 + $0x20] sm:$0xf] %vm960, %v1138
  %1226 = vst.msk [vmem:[%s7 + $0x24] sm:$0xf] %vm960, %v1140
  %1227 = vst.msk [vmem:[%s7 + $0x28] sm:$0xf] %vm960, %v1142
  %1228 = vst.msk [vmem:[%s7 + $0x2c] sm:$0xf] %vm960, %v1144
  %1229 = vst.msk [vmem:[%s7 + $0x30] sm:$0xf] %vm960, %v1146
  %1230 = vst.msk [vmem:[%s7 + $0x34] sm:$0xf] %vm960, %v1148
  %1231 = vst.msk [vmem:[%s7 + $0x38] sm:$0xf] %vm960, %v1150
  %1232 = vst.msk [vmem:[%s7 + $0x3c] sm:$0xf] %vm960, %v1152
  %1233 = vst.msk [vmem:[%s7 + $0x40] sm:$0xf] %vm960, %v1154
  %1234 = vst.msk [vmem:[%s7 + $0x44] sm:$0xf] %vm960, %v1156
  %1235 = vst.msk [vmem:[%s7 + $0x48] sm:$0xf] %vm960, %v1158
  %1236 = vst.msk [vmem:[%s7 + $0x4c] sm:$0xf] %vm960, %v1160
  %1237 = vst.msk [vmem:[%s7 + $0x50] sm:$0xf] %vm960, %v1162
  %1238 = vst.msk [vmem:[%s7 + $0x54] sm:$0xf] %vm960, %v1164
  %1239 = vst.msk [vmem:[%s7 + $0x58] sm:$0xf] %vm960, %v1166
  %1240 = vst.msk [vmem:[%s7 + $0x5c] sm:$0xf] %vm960, %v1168
  %1241 = vst.msk [vmem:[%s7 + $0x60] sm:$0xf] %vm960, %v1170
  %1242 = vst.msk [vmem:[%s7 + $0x64] sm:$0xf] %vm960, %v1172
  %1243 = vst.msk [vmem:[%s7 + $0x68] sm:$0xf] %vm960, %v1174
  %1244 = vst.msk [vmem:[%s7 + $0x6c] sm:$0xf] %vm960, %v1176
  %1245 = vst.msk [vmem:[%s7 + $0x70] sm:$0xf] %vm960, %v1178
  %1246 = vst.msk [vmem:[%s7 + $0x74] sm:$0xf] %vm960, %v1180
  %1247 = vst.msk [vmem:[%s7 + $0x78] sm:$0xf] %vm960, %v1182
  %1248 = vst.msk [vmem:[%s7 + $0x7c] sm:$0xf] %vm960, %v1184
  %1249 = vrot.lane.b32.xlu0 %v896, 112
  %v1250 = vpop.permute.xlu0 %1249
  %1251 = vrot.lane.b32.xlu0 %v897, 112
  %v1252 = vpop.permute.xlu0 %1251
  %1253 = vrot.lane.b32.xlu0 %v898, 112
  %v1254 = vpop.permute.xlu0 %1253
  %1255 = vrot.lane.b32.xlu0 %v899, 112
  %v1256 = vpop.permute.xlu0 %1255
  %1257 = vrot.lane.b32.xlu0 %v900, 112
  %v1258 = vpop.permute.xlu0 %1257
  %1259 = vrot.lane.b32.xlu0 %v901, 112
  %v1260 = vpop.permute.xlu0 %1259
  %1261 = vrot.lane.b32.xlu0 %v902, 112
  %v1262 = vpop.permute.xlu0 %1261
  %1263 = vrot.lane.b32.xlu0 %v903, 112
  %v1264 = vpop.permute.xlu0 %1263
  %1265 = vrot.lane.b32.xlu0 %v904, 112
  %v1266 = vpop.permute.xlu0 %1265
  %1267 = vrot.lane.b32.xlu0 %v905, 112
  %v1268 = vpop.permute.xlu0 %1267
  %1269 = vrot.lane.b32.xlu0 %v906, 112
  %v1270 = vpop.permute.xlu0 %1269
  %1271 = vrot.lane.b32.xlu0 %v907, 112
  %v1272 = vpop.permute.xlu0 %1271
  %1273 = vrot.lane.b32.xlu0 %v908, 112
  %v1274 = vpop.permute.xlu0 %1273
  %1275 = vrot.lane.b32.xlu0 %v909, 112
  %v1276 = vpop.permute.xlu0 %1275
  %1277 = vrot.lane.b32.xlu0 %v910, 112
  %v1278 = vpop.permute.xlu0 %1277
  %1279 = vrot.lane.b32.xlu0 %v911, 112
  %v1280 = vpop.permute.xlu0 %1279
  %1281 = vrot.lane.b32.xlu0 %v912, 112
  %v1282 = vpop.permute.xlu0 %1281
  %1283 = vrot.lane.b32.xlu0 %v913, 112
  %v1284 = vpop.permute.xlu0 %1283
  %1285 = vrot.lane.b32.xlu0 %v914, 112
  %v1286 = vpop.permute.xlu0 %1285
  %1287 = vrot.lane.b32.xlu0 %v915, 112
  %v1288 = vpop.permute.xlu0 %1287
  %1289 = vrot.lane.b32.xlu0 %v916, 112
  %v1290 = vpop.permute.xlu0 %1289
  %1291 = vrot.lane.b32.xlu0 %v917, 112
  %v1292 = vpop.permute.xlu0 %1291
  %1293 = vrot.lane.b32.xlu0 %v918, 112
  %v1294 = vpop.permute.xlu0 %1293
  %1295 = vrot.lane.b32.xlu0 %v919, 112
  %v1296 = vpop.permute.xlu0 %1295
  %1297 = vrot.lane.b32.xlu0 %v920, 112
  %v1298 = vpop.permute.xlu0 %1297
  %1299 = vrot.lane.b32.xlu0 %v921, 112
  %v1300 = vpop.permute.xlu0 %1299
  %1301 = vrot.lane.b32.xlu0 %v922, 112
  %v1302 = vpop.permute.xlu0 %1301
  %1303 = vrot.lane.b32.xlu0 %v923, 112
  %v1304 = vpop.permute.xlu0 %1303
  %1305 = vrot.lane.b32.xlu0 %v924, 112
  %v1306 = vpop.permute.xlu0 %1305
  %1307 = vrot.lane.b32.xlu0 %v925, 112
  %v1308 = vpop.permute.xlu0 %1307
  %1309 = vrot.lane.b32.xlu0 %v926, 112
  %v1310 = vpop.permute.xlu0 %1309
  %1311 = vrot.lane.b32.xlu0 %v927, 112
  %v1312 = vpop.permute.xlu0 %1311
  %s1345 = scalar_lea.vmem %s5, 128
  %1346 = vst.msk [vmem:[%s1345] sm:$0xf] %vm960, %v1250
  %1347 = vst.msk [vmem:[%s1345 + $0x4] sm:$0xf] %vm960, %v1252
  %1348 = vst.msk [vmem:[%s1345 + $0x8] sm:$0xf] %vm960, %v1254
  %1349 = vst.msk [vmem:[%s1345 + $0xc] sm:$0xf] %vm960, %v1256
  %1350 = vst.msk [vmem:[%s1345 + $0x10] sm:$0xf] %vm960, %v1258
  %1351 = vst.msk [vmem:[%s1345 + $0x14] sm:$0xf] %vm960, %v1260
  %1352 = vst.msk [vmem:[%s1345 + $0x18] sm:$0xf] %vm960, %v1262
  %1353 = vst.msk [vmem:[%s1345 + $0x1c] sm:$0xf] %vm960, %v1264
  %1354 = vst.msk [vmem:[%s1345 + $0x20] sm:$0xf] %vm960, %v1266
  %1355 = vst.msk [vmem:[%s1345 + $0x24] sm:$0xf] %vm960, %v1268
  %1356 = vst.msk [vmem:[%s1345 + $0x28] sm:$0xf] %vm960, %v1270
  %1357 = vst.msk [vmem:[%s1345 + $0x2c] sm:$0xf] %vm960, %v1272
  %1358 = vst.msk [vmem:[%s1345 + $0x30] sm:$0xf] %vm960, %v1274
  %1359 = vst.msk [vmem:[%s1345 + $0x34] sm:$0xf] %vm960, %v1276
  %1360 = vst.msk [vmem:[%s1345 + $0x38] sm:$0xf] %vm960, %v1278
  %1361 = vst.msk [vmem:[%s1345 + $0x3c] sm:$0xf] %vm960, %v1280
  %1362 = vst.msk [vmem:[%s1345 + $0x40] sm:$0xf] %vm960, %v1282
  %1363 = vst.msk [vmem:[%s1345 + $0x44] sm:$0xf] %vm960, %v1284
  %1364 = vst.msk [vmem:[%s1345 + $0x48] sm:$0xf] %vm960, %v1286
  %1365 = vst.msk [vmem:[%s1345 + $0x4c] sm:$0xf] %vm960, %v1288
  %1366 = vst.msk [vmem:[%s1345 + $0x50] sm:$0xf] %vm960, %v1290
  %1367 = vst.msk [vmem:[%s1345 + $0x54] sm:$0xf] %vm960, %v1292
  %1368 = vst.msk [vmem:[%s1345 + $0x58] sm:$0xf] %vm960, %v1294
  %1369 = vst.msk [vmem:[%s1345 + $0x5c] sm:$0xf] %vm960, %v1296
  %1370 = vst.msk [vmem:[%s1345 + $0x60] sm:$0xf] %vm960, %v1298
  %1371 = vst.msk [vmem:[%s1345 + $0x64] sm:$0xf] %vm960, %v1300
  %1372 = vst.msk [vmem:[%s1345 + $0x68] sm:$0xf] %vm960, %v1302
  %1373 = vst.msk [vmem:[%s1345 + $0x6c] sm:$0xf] %vm960, %v1304
  %1374 = vst.msk [vmem:[%s1345 + $0x70] sm:$0xf] %vm960, %v1306
  %1375 = vst.msk [vmem:[%s1345 + $0x74] sm:$0xf] %vm960, %v1308
  %1376 = vst.msk [vmem:[%s1345 + $0x78] sm:$0xf] %vm960, %v1310
  %1377 = vst.msk [vmem:[%s1345 + $0x7c] sm:$0xf] %vm960, %v1312
  %1378 = vrot.lane.b32.xlu0 %v896, 80
  %v1379 = vpop.permute.xlu0 %1378
  %1380 = vrot.lane.b32.xlu0 %v897, 80
  %v1381 = vpop.permute.xlu0 %1380
  %1382 = vrot.lane.b32.xlu0 %v898, 80
  %v1383 = vpop.permute.xlu0 %1382
  %1384 = vrot.lane.b32.xlu0 %v899, 80
  %v1385 = vpop.permute.xlu0 %1384
  %1386 = vrot.lane.b32.xlu0 %v900, 80
  %v1387 = vpop.permute.xlu0 %1386
  %1388 = vrot.lane.b32.xlu0 %v901, 80
  %v1389 = vpop.permute.xlu0 %1388
  %1390 = vrot.lane.b32.xlu0 %v902, 80
  %v1391 = vpop.permute.xlu0 %1390
  %1392 = vrot.lane.b32.xlu0 %v903, 80
  %v1393 = vpop.permute.xlu0 %1392
  %1394 = vrot.lane.b32.xlu0 %v904, 80
  %v1395 = vpop.permute.xlu0 %1394
  %1396 = vrot.lane.b32.xlu0 %v905, 80
  %v1397 = vpop.permute.xlu0 %1396
  %1398 = vrot.lane.b32.xlu0 %v906, 80
  %v1399 = vpop.permute.xlu0 %1398
  %1400 = vrot.lane.b32.xlu0 %v907, 80
  %v1401 = vpop.permute.xlu0 %1400
  %1402 = vrot.lane.b32.xlu0 %v908, 80
  %v1403 = vpop.permute.xlu0 %1402
  %1404 = vrot.lane.b32.xlu0 %v909, 80
  %v1405 = vpop.permute.xlu0 %1404
  %1406 = vrot.lane.b32.xlu0 %v910, 80
  %v1407 = vpop.permute.xlu0 %1406
  %1408 = vrot.lane.b32.xlu0 %v911, 80
  %v1409 = vpop.permute.xlu0 %1408
  %1410 = vrot.lane.b32.xlu0 %v912, 80
  %v1411 = vpop.permute.xlu0 %1410
  %1412 = vrot.lane.b32.xlu0 %v913, 80
  %v1413 = vpop.permute.xlu0 %1412
  %1414 = vrot.lane.b32.xlu0 %v914, 80
  %v1415 = vpop.permute.xlu0 %1414
  %1416 = vrot.lane.b32.xlu0 %v915, 80
  %v1417 = vpop.permute.xlu0 %1416
  %1418 = vrot.lane.b32.xlu0 %v916, 80
  %v1419 = vpop.permute.xlu0 %1418
  %1420 = vrot.lane.b32.xlu0 %v917, 80
  %v1421 = vpop.permute.xlu0 %1420
  %1422 = vrot.lane.b32.xlu0 %v918, 80
  %v1423 = vpop.permute.xlu0 %1422
  %1424 = vrot.lane.b32.xlu0 %v919, 80
  %v1425 = vpop.permute.xlu0 %1424
  %1426 = vrot.lane.b32.xlu0 %v920, 80
  %v1427 = vpop.permute.xlu0 %1426
  %1428 = vrot.lane.b32.xlu0 %v921, 80
  %v1429 = vpop.permute.xlu0 %1428
  %1430 = vrot.lane.b32.xlu0 %v922, 80
  %v1431 = vpop.permute.xlu0 %1430
  %1432 = vrot.lane.b32.xlu0 %v923, 80
  %v1433 = vpop.permute.xlu0 %1432
  %1434 = vrot.lane.b32.xlu0 %v924, 80
  %v1435 = vpop.permute.xlu0 %1434
  %1436 = vrot.lane.b32.xlu0 %v925, 80
  %v1437 = vpop.permute.xlu0 %1436
  %1438 = vrot.lane.b32.xlu0 %v926, 80
  %v1439 = vpop.permute.xlu0 %1438
  %1440 = vrot.lane.b32.xlu0 %v927, 80
  %v1441 = vpop.permute.xlu0 %1440
  %s1474 = scalar_lea.vmem %s6, 128
  %1475 = vst.msk [vmem:[%s1474] sm:$0xf] %vm960, %v1379
  %1476 = vst.msk [vmem:[%s1474 + $0x4] sm:$0xf] %vm960, %v1381
  %1477 = vst.msk [vmem:[%s1474 + $0x8] sm:$0xf] %vm960, %v1383
  %1478 = vst.msk [vmem:[%s1474 + $0xc] sm:$0xf] %vm960, %v1385
  %1479 = vst.msk [vmem:[%s1474 + $0x10] sm:$0xf] %vm960, %v1387
  %1480 = vst.msk [vmem:[%s1474 + $0x14] sm:$0xf] %vm960, %v1389
  %1481 = vst.msk [vmem:[%s1474 + $0x18] sm:$0xf] %vm960, %v1391
  %1482 = vst.msk [vmem:[%s1474 + $0x1c] sm:$0xf] %vm960, %v1393
  %1483 = vst.msk [vmem:[%s1474 + $0x20] sm:$0xf] %vm960, %v1395
  %1484 = vst.msk [vmem:[%s1474 + $0x24] sm:$0xf] %vm960, %v1397
  %1485 = vst.msk [vmem:[%s1474 + $0x28] sm:$0xf] %vm960, %v1399
  %1486 = vst.msk [vmem:[%s1474 + $0x2c] sm:$0xf] %vm960, %v1401
  %1487 = vst.msk [vmem:[%s1474 + $0x30] sm:$0xf] %vm960, %v1403
  %1488 = vst.msk [vmem:[%s1474 + $0x34] sm:$0xf] %vm960, %v1405
  %1489 = vst.msk [vmem:[%s1474 + $0x38] sm:$0xf] %vm960, %v1407
  %1490 = vst.msk [vmem:[%s1474 + $0x3c] sm:$0xf] %vm960, %v1409
  %1491 = vst.msk [vmem:[%s1474 + $0x40] sm:$0xf] %vm960, %v1411
  %1492 = vst.msk [vmem:[%s1474 + $0x44] sm:$0xf] %vm960, %v1413
  %1493 = vst.msk [vmem:[%s1474 + $0x48] sm:$0xf] %vm960, %v1415
  %1494 = vst.msk [vmem:[%s1474 + $0x4c] sm:$0xf] %vm960, %v1417
  %1495 = vst.msk [vmem:[%s1474 + $0x50] sm:$0xf] %vm960, %v1419
  %1496 = vst.msk [vmem:[%s1474 + $0x54] sm:$0xf] %vm960, %v1421
  %1497 = vst.msk [vmem:[%s1474 + $0x58] sm:$0xf] %vm960, %v1423
  %1498 = vst.msk [vmem:[%s1474 + $0x5c] sm:$0xf] %vm960, %v1425
  %1499 = vst.msk [vmem:[%s1474 + $0x60] sm:$0xf] %vm960, %v1427
  %1500 = vst.msk [vmem:[%s1474 + $0x64] sm:$0xf] %vm960, %v1429
  %1501 = vst.msk [vmem:[%s1474 + $0x68] sm:$0xf] %vm960, %v1431
  %1502 = vst.msk [vmem:[%s1474 + $0x6c] sm:$0xf] %vm960, %v1433
  %1503 = vst.msk [vmem:[%s1474 + $0x70] sm:$0xf] %vm960, %v1435
  %1504 = vst.msk [vmem:[%s1474 + $0x74] sm:$0xf] %vm960, %v1437
  %1505 = vst.msk [vmem:[%s1474 + $0x78] sm:$0xf] %vm960, %v1439
  %1506 = vst.msk [vmem:[%s1474 + $0x7c] sm:$0xf] %vm960, %v1441
  %1507 = vrot.lane.b32.xlu0 %v896, 48
  %v1508 = vpop.permute.xlu0 %1507
  %1509 = vrot.lane.b32.xlu0 %v897, 48
  %v1510 = vpop.permute.xlu0 %1509
  %1511 = vrot.lane.b32.xlu0 %v898, 48
  %v1512 = vpop.permute.xlu0 %1511
  %1513 = vrot.lane.b32.xlu0 %v899, 48
  %v1514 = vpop.permute.xlu0 %1513
  %1515 = vrot.lane.b32.xlu0 %v900, 48
  %v1516 = vpop.permute.xlu0 %1515
  %1517 = vrot.lane.b32.xlu0 %v901, 48
  %v1518 = vpop.permute.xlu0 %1517
  %1519 = vrot.lane.b32.xlu0 %v902, 48
  %v1520 = vpop.permute.xlu0 %1519
  %1521 = vrot.lane.b32.xlu0 %v903, 48
  %v1522 = vpop.permute.xlu0 %1521
  %1523 = vrot.lane.b32.xlu0 %v904, 48
  %v1524 = vpop.permute.xlu0 %1523
  %1525 = vrot.lane.b32.xlu0 %v905, 48
  %v1526 = vpop.permute.xlu0 %1525
  %1527 = vrot.lane.b32.xlu0 %v906, 48
  %v1528 = vpop.permute.xlu0 %1527
  %1529 = vrot.lane.b32.xlu0 %v907, 48
  %v1530 = vpop.permute.xlu0 %1529
  %1531 = vrot.lane.b32.xlu0 %v908, 48
  %v1532 = vpop.permute.xlu0 %1531
  %1533 = vrot.lane.b32.xlu0 %v909, 48
  %v1534 = vpop.permute.xlu0 %1533
  %1535 = vrot.lane.b32.xlu0 %v910, 48
  %v1536 = vpop.permute.xlu0 %1535
  %1537 = vrot.lane.b32.xlu0 %v911, 48
  %v1538 = vpop.permute.xlu0 %1537
  %1539 = vrot.lane.b32.xlu0 %v912, 48
  %v1540 = vpop.permute.xlu0 %1539
  %1541 = vrot.lane.b32.xlu0 %v913, 48
  %v1542 = vpop.permute.xlu0 %1541
  %1543 = vrot.lane.b32.xlu0 %v914, 48
  %v1544 = vpop.permute.xlu0 %1543
  %1545 = vrot.lane.b32.xlu0 %v915, 48
  %v1546 = vpop.permute.xlu0 %1545
  %1547 = vrot.lane.b32.xlu0 %v916, 48
  %v1548 = vpop.permute.xlu0 %1547
  %1549 = vrot.lane.b32.xlu0 %v917, 48
  %v1550 = vpop.permute.xlu0 %1549
  %1551 = vrot.lane.b32.xlu0 %v918, 48
  %v1552 = vpop.permute.xlu0 %1551
  %1553 = vrot.lane.b32.xlu0 %v919, 48
  %v1554 = vpop.permute.xlu0 %1553
  %1555 = vrot.lane.b32.xlu0 %v920, 48
  %v1556 = vpop.permute.xlu0 %1555
  %1557 = vrot.lane.b32.xlu0 %v921, 48
  %v1558 = vpop.permute.xlu0 %1557
  %1559 = vrot.lane.b32.xlu0 %v922, 48
  %v1560 = vpop.permute.xlu0 %1559
  %1561 = vrot.lane.b32.xlu0 %v923, 48
  %v1562 = vpop.permute.xlu0 %1561
  %1563 = vrot.lane.b32.xlu0 %v924, 48
  %v1564 = vpop.permute.xlu0 %1563
  %1565 = vrot.lane.b32.xlu0 %v925, 48
  %v1566 = vpop.permute.xlu0 %1565
  %1567 = vrot.lane.b32.xlu0 %v926, 48
  %v1568 = vpop.permute.xlu0 %1567
  %1569 = vrot.lane.b32.xlu0 %v927, 48
  %v1570 = vpop.permute.xlu0 %1569
  %s1603 = scalar_lea.vmem %s7, 128
  %1604 = vst.msk [vmem:[%s1603] sm:$0xf] %vm960, %v1508
  %1605 = vst.msk [vmem:[%s1603 + $0x4] sm:$0xf] %vm960, %v1510
  %1606 = vst.msk [vmem:[%s1603 + $0x8] sm:$0xf] %vm960, %v1512
  %1607 = vst.msk [vmem:[%s1603 + $0xc] sm:$0xf] %vm960, %v1514
  %1608 = vst.msk [vmem:[%s1603 + $0x10] sm:$0xf] %vm960, %v1516
  %1609 = vst.msk [vmem:[%s1603 + $0x14] sm:$0xf] %vm960, %v1518
  %1610 = vst.msk [vmem:[%s1603 + $0x18] sm:$0xf] %vm960, %v1520
  %1611 = vst.msk [vmem:[%s1603 + $0x1c] sm:$0xf] %vm960, %v1522
  %1612 = vst.msk [vmem:[%s1603 + $0x20] sm:$0xf] %vm960, %v1524
  %1613 = vst.msk [vmem:[%s1603 + $0x24] sm:$0xf] %vm960, %v1526
  %1614 = vst.msk [vmem:[%s1603 + $0x28] sm:$0xf] %vm960, %v1528
  %1615 = vst.msk [vmem:[%s1603 + $0x2c] sm:$0xf] %vm960, %v1530
  %1616 = vst.msk [vmem:[%s1603 + $0x30] sm:$0xf] %vm960, %v1532
  %1617 = vst.msk [vmem:[%s1603 + $0x34] sm:$0xf] %vm960, %v1534
  %1618 = vst.msk [vmem:[%s1603 + $0x38] sm:$0xf] %vm960, %v1536
  %1619 = vst.msk [vmem:[%s1603 + $0x3c] sm:$0xf] %vm960, %v1538
  %1620 = vst.msk [vmem:[%s1603 + $0x40] sm:$0xf] %vm960, %v1540
  %1621 = vst.msk [vmem:[%s1603 + $0x44] sm:$0xf] %vm960, %v1542
  %1622 = vst.msk [vmem:[%s1603 + $0x48] sm:$0xf] %vm960, %v1544
  %1623 = vst.msk [vmem:[%s1603 + $0x4c] sm:$0xf] %vm960, %v1546
  %1624 = vst.msk [vmem:[%s1603 + $0x50] sm:$0xf] %vm960, %v1548
  %1625 = vst.msk [vmem:[%s1603 + $0x54] sm:$0xf] %vm960, %v1550
  %1626 = vst.msk [vmem:[%s1603 + $0x58] sm:$0xf] %vm960, %v1552
  %1627 = vst.msk [vmem:[%s1603 + $0x5c] sm:$0xf] %vm960, %v1554
  %1628 = vst.msk [vmem:[%s1603 + $0x60] sm:$0xf] %vm960, %v1556
  %1629 = vst.msk [vmem:[%s1603 + $0x64] sm:$0xf] %vm960, %v1558
  %1630 = vst.msk [vmem:[%s1603 + $0x68] sm:$0xf] %vm960, %v1560
  %1631 = vst.msk [vmem:[%s1603 + $0x6c] sm:$0xf] %vm960, %v1562
  %1632 = vst.msk [vmem:[%s1603 + $0x70] sm:$0xf] %vm960, %v1564
  %1633 = vst.msk [vmem:[%s1603 + $0x74] sm:$0xf] %vm960, %v1566
  %1634 = vst.msk [vmem:[%s1603 + $0x78] sm:$0xf] %vm960, %v1568
  %1635 = vst.msk [vmem:[%s1603 + $0x7c] sm:$0xf] %vm960, %v1570
  // Predicated region
  $region22: #{tpu_custom_call.1} parent=0 // pred_check
    _
  $region23: #{tpu_custom_call.1} parent=0 // pred_check_branch
    %1637 = sbr.rel (0) target = $region25
  $region24: #{tpu_custom_call.1} parent=0 // pred_region
    _
  $region25: #{tpu_custom_call.1} parent=0 // pred_fallthru
    _
  // Predicated region
  $region26: #{tpu_custom_call.1} parent=0 // pred_check
    _
  $region27: #{tpu_custom_call.1} parent=0 // pred_check_branch
    %1639 = sbr.rel (0) target = $region29
  $region28: #{tpu_custom_call.1} parent=0 // pred_region
    _
  $region29: #{tpu_custom_call.1} parent=0 // pred_fallthru
    _
  // Predicated region
  $region30: #{tpu_custom_call.1} parent=0 // pred_check
    _
  $region31: #{tpu_custom_call.1} parent=0 // pred_check_branch
    %1641 = sbr.rel (0) target = $region33
  $region32: #{tpu_custom_call.1} parent=0 // pred_region
    _
  $region33: #{tpu_custom_call.1} parent=0 // pred_fallthru
    _
  // Predicated region
  $region34: #{tpu_custom_call.1} parent=0 // pred_check
    _
  $region35: #{tpu_custom_call.1} parent=0 // pred_check_branch
    %1643 = sbr.rel (0) target = $region37
  $region36: #{tpu_custom_call.1} parent=0 // pred_region
    _
  $region37: #{tpu_custom_call.1} parent=0 // pred_fallthru
    _
  // Predicated region
  $region38: #{tpu_custom_call.1} parent=0 // pred_check
    _
  $region39: #{tpu_custom_call.1} parent=0 // pred_check_branch
    %1645 = sbr.rel (0) target = $region41
  $region40: #{tpu_custom_call.1} parent=0 // pred_region
    _
  $region41: #{tpu_custom_call.1} parent=0 // pred_fallthru
    _
  // Predicated region
  $region42: #{tpu_custom_call.1} parent=0 // pred_check
    _
  $region43: #{tpu_custom_call.1} parent=0 // pred_check_branch
    %1647 = sbr.rel (0) target = $region45
  $region44: #{tpu_custom_call.1} parent=0 // pred_region
    _
  $region45: #{tpu_custom_call.1} parent=0 // pred_fallthru
    _

</llo_original>
